<compile_context>
chip_gen: v7x
topology: tpu7x:2x2x1
jax: 0.10.0
libtpu: 0.0.40
codegen_flags: <defaults>
</compile_context>

<pallas_src>
import jax
import jax.numpy as jnp
from jax import lax
from jax.experimental import pallas as pl
from jax.experimental.pallas import tpu as pltpu

_EPS = 1e-5
_LANE = 128


def _round_up(n, m):
    return ((n + m - 1) // m) * m


# --------------------------- Pallas kernel ----------------------------------

def _make_bottleneck_kernel(H, W, B):
    """Kernel factory; H, W spatial dims, B = vertical halo rows (>= W)."""
    M = H * W

    def kernel(x_ref, w1_ref, b1_ref, w2_ref, b2_ref, w3_ref, b3_ref,
               o_ref, ypad_ref):
        Pp = b1_ref.shape[1]
        lanes = ypad_ref.shape[1]                 # == 3 * Pp

        # Zero only the 2*B vertical-halo rows each step; the M interior rows
        # are fully overwritten below (no full-scratch zero-fill).
        zeros_border = jnp.zeros((B, lanes), ypad_ref.dtype)
        ypad_ref[0:B, :] = zeros_border
        ypad_ref[B + M:B + M + B, :] = zeros_border

        x = x_ref[0]                                            # (M, Cinp) bf16

        # ---- conv1 (1x1, BN scale pre-folded into w1) + bias + relu ----
        h1 = jnp.dot(x, w1_ref[...], preferred_element_type=jnp.float32)
        h1 = jnp.maximum(h1 + b1_ref[...], 0.0)                 # (M, Pp) f32

        # ---- stage the three dx-shifted, edge-masked planes of h1 ----
        # centre plane first; the +-1-row reads of it (halo rows give zeros)
        # plus a column mask build the dx = -1 / +1 planes.
        ypad_ref[B:B + M, Pp:2 * Pp] = h1
        col = lax.broadcasted_iota(jnp.int32, (M, 1), 0) % W
        left_src = ypad_ref[B - 1:B - 1 + M, Pp:2 * Pp]         # h1[m-1]
        right_src = ypad_ref[B + 1:B + 1 + M, Pp:2 * Pp]        # h1[m+1]
        ypad_ref[B:B + M, 0:Pp] = jnp.where(col > 0, left_src, 0.0)
        ypad_ref[B:B + M, 2 * Pp:3 * Pp] = jnp.where(col < W - 1, right_src, 0.0)

        # ---- conv2 (3x3, pad=1): 3 MXU matmuls with K = 3*Pp (one per dy) ----
        acc = None
        for dy in (-1, 0, 1):
            start = B + dy * W                                  # static offset
            operand = ypad_ref[start:start + M, :].astype(jnp.bfloat16)
            part = jnp.dot(operand, w2_ref[dy + 1],
                           preferred_element_type=jnp.float32)
            acc = part if acc is None else acc + part
        h2 = jnp.maximum(acc + b2_ref[...], 0.0)                # (M, Pp) f32

        # ---- conv3 (1x1) + bias + residual add + relu (bf16 writeback) ----
        # Residual is taken from the bf16 input slab (deliberate inference-
        # precision choice; output itself is bf16 anyway).
        h3 = jnp.dot(h2.astype(jnp.bfloat16), w3_ref[...],
                     preferred_element_type=jnp.float32)        # (M, Coutp)
        h3 = h3 + b3_ref[...] + x.astype(jnp.float32)
        o_ref[0] = jnp.maximum(h3, 0.0).astype(o_ref.dtype)

    return kernel


# --------------------------- pallas_call wrapper -----------------------------

def _vmem_limit_bytes(M, Cinp, Pp, Coutp, rows):
    bf, f32 = 2, 4
    act_blocks = 2 * M * (Cinp + Coutp) * bf            # x / out double-buffered
    weights = 2 * ((Cinp * Pp + 9 * Pp * Pp + Pp * Coutp) * bf
                   + (2 * Pp + Coutp) * f32)
    scratch = rows * 3 * Pp * f32
    temps = (6 * M * Pp + 2 * M * Coutp) * f32          # h1/acc/h2/operands/h3
    est = act_blocks + weights + scratch + temps
    return int(min(max(2 * est, 16 * 2 ** 20), 48 * 2 ** 20))


def _bottleneck_call(x_p, params, H, W):
    N, M, Cinp = x_p.shape
    assert M == H * W
    Pp = params["b1"].shape[1]
    Coutp = params["w3"].shape[1]
    # Identity residual add happens in the padded channel space.
    assert Cinp == Coutp

    B = _round_up(W, 8)              # vertical halo rows (>= W, sublane aligned)
    rows = 2 * B + M

    kernel = _make_bottleneck_kernel(H, W, B)
    const2 = lambda b: (0, 0)
    const3 = lambda b: (0, 0, 0)

    return pl.pallas_call(
        kernel,
        out_shape=jax.ShapeDtypeStruct((N, M, Coutp), jnp.bfloat16),
        grid_spec=pltpu.PrefetchScalarGridSpec(
            num_scalar_prefetch=0,
            grid=(N,),
            in_specs=[
                pl.BlockSpec((1, M, Cinp), lambda b: (b, 0, 0)),   # x (bf16)
                pl.BlockSpec((Cinp, Pp), const2),                   # w1 (scaled)
                pl.BlockSpec((1, Pp), const2),                      # b1
                pl.BlockSpec((3, 3 * Pp, Pp), const3),              # w2 (per-dy)
                pl.BlockSpec((1, Pp), const2),                      # b2
                pl.BlockSpec((Pp, Coutp), const2),                  # w3 (scaled)
                pl.BlockSpec((1, Coutp), const2),                   # b3
            ],
            out_specs=pl.BlockSpec((1, M, Coutp), lambda b: (b, 0, 0)),
            scratch_shapes=[pltpu.VMEM((rows, 3 * Pp), jnp.float32)],
        ),
        compiler_params=pltpu.CompilerParams(
            dimension_semantics=("parallel",),
            vmem_limit_bytes=_vmem_limit_bytes(M, Cinp, Pp, Coutp, rows),
        ),
    )(x_p, params["w1"], params["b1"], params["w2"], params["b2"],
      params["w3"], params["b3"])


# --------------------------- Bottleneck forward ------------------------------

def bottleneck_forward_padded(x_p, params, H, W):
    """(N, H*W, Cpad) bf16 in -> (N, H*W, Cpad) bf16 out (chainable layout)."""
    return _bottleneck_call(x_p, params, H, W)


def bottleneck_forward(x_nchw, params, meta):
    N, Cin, H, W = x_nchw.shape
    # Un-padded check: identity skip requires inplanes == 4 * planes.
    assert Cin == meta["cin"] and meta["cin"] == meta["cout"], (
        "identity-skip bottleneck requires inplanes == 4*planes")

    x_p = jnp.pad(
        jnp.transpose(x_nchw, (0, 2, 3, 1)).reshape(N, H * W, Cin),
        ((0, 0), (0, 0), (0, meta["cinp"] - Cin))).astype(jnp.bfloat16)
    out = bottleneck_forward_padded(x_p, params, H, W)     # (N, M, Coutp) bf16
    out = out[:, :, :Cin].astype(jnp.float32).reshape(N, H, W, Cin)
    return jnp.transpose(out, (0, 3, 1, 2))


# --------------------------- parameter init ----------------------------------

def init_bottleneck_params(key, inplanes, planes):
    ks = jax.random.split(key, 15)
    Cin, P, Cout = inplanes, planes, 4 * planes
    Cinp, Pp, Coutp = (_round_up(c, _LANE) for c in (Cin, P, Cout))

    def bn_raw(kg, kb, km, kv, c):
        gamma = 1.0 + 0.1 * jax.random.normal(kg, (c,), jnp.float32)
        beta = 0.1 * jax.random.normal(kb, (c,), jnp.float32)
        mean = 0.1 * jax.random.normal(km, (c,), jnp.float32)
        var = jnp.abs(jax.random.normal(kv, (c,), jnp.float32)) + 0.5
        return gamma, beta, mean, var

    def fold(bn):
        gamma, beta, mean, var = bn
        scale = gamma / jnp.sqrt(var + _EPS)
        bias = beta - mean * scale
        return scale, bias

    def pad_bias(v, n):
        return jnp.zeros((1, n), jnp.float32).at[0, :v.shape[0]].set(v)

    # Conv weights in PyTorch (out, in, kh, kw) layout.
    w1_t = 0.2 * jax.random.normal(ks[0], (P, Cin, 1, 1), jnp.float32)
    w2_t = 0.2 * jax.random.normal(ks[1], (P, P, 3, 3), jnp.float32)
    w3_t = 0.2 * jax.random.normal(ks[2], (Cout, P, 1, 1), jnp.float32)
    bn1 = bn_raw(*ks[3:7], P)
    bn2 = bn_raw(*ks[7:11], P)
    bn3 = bn_raw(*ks[11:15], Cout)
    s1, b1 = fold(bn1)
    s2, b2 = fold(bn2)
    s3, b3 = fold(bn3)

    # Matmul layout (in, out), BN scale folded into output columns, lane-padded.
    w1 = jnp.zeros((Cinp, Pp), jnp.float32).at[:Cin, :P].set(
        w1_t[:, :, 0, 0].T * s1[None, :])
    w2 = jnp.zeros((3, 3 * Pp, Pp), jnp.float32)
    for ky in range(3):
        for kx in range(3):
            blk = w2_t[:, :, ky, kx].T * s2[None, :]            # (P_in, P_out)
            w2 = w2.at[ky, kx * Pp:kx * Pp + P, :P].set(blk)
    w3 = jnp.zeros((Pp, Coutp), jnp.float32).at[:P, :Cout].set(
        w3_t[:, :, 0, 0].T * s3[None, :])

    params = {
        "w1": w1.astype(jnp.bfloat16), "b1": pad_bias(b1, Pp),
        "w2": w2.astype(jnp.bfloat16), "b2": pad_bias(b2, Pp),
        "w3": w3.astype(jnp.bfloat16), "b3": pad_bias(b3, Coutp),
    }
    meta = {"cin": Cin, "planes": P, "cout": Cout,
            "cinp": Cinp, "pp": Pp, "coutp": Coutp}
    raw = {"w1_t": w1_t, "w2_t": w2_t, "w3_t": w3_t,
           "bn1": bn1, "bn2": bn2, "bn3": bn3}
    return params, meta, raw


# --------------------------- pure-JAX reference -------------------------------

def bottleneck_ref(x_nchw, raw):
    def conv(x, w, pad=0):
        return lax.conv_general_dilated(
            x, w, (1, 1), [(pad, pad), (pad, pad)],
            dimension_numbers=("NCHW", "OIHW", "NCHW"))

    def bn(x, p):
        gamma, beta, mean, var = (t[None, :, None, None] for t in p)
        return (x - mean) / jnp.sqrt(var + _EPS) * gamma + beta

    h = jax.nn.relu(bn(conv(x_nchw, raw["w1_t"]), raw["bn1"]))
    h = jax.nn.relu(bn(conv(h, raw["w2_t"], pad=1), raw["bn2"]))
    h = bn(conv(h, raw["w3_t"]), raw["bn3"])
    return jax.nn.relu(h + x_nchw)


# --------------------------- main ---------------------------------------------

def _run_case(key, N, planes, H, W, tol):
    inplanes = 4 * planes
    k_x, k_p = jax.random.split(key)
    x = jax.random.normal(k_x, (N, inplanes, H, W), jnp.float32)
    params, meta, raw = init_bottleneck_params(k_p, inplanes, planes)

    fwd = jax.jit(lambda xx, pp: bottleneck_forward(xx, pp, meta))
    out = jax.block_until_ready(fwd(x, params))
    ref = jax.block_until_ready(bottleneck_ref(x, raw))

    assert out.shape == (N, inplanes, H, W)
    assert bool(jnp.all(jnp.isfinite(out)))
    scale = float(jnp.max(jnp.abs(ref))) + 1e-6
    rel = float(jnp.max(jnp.abs(out - ref))) / scale
    # bf16 MXU operands / bf16 output vs f32 reference -> relative-to-max check.
    assert rel < tol, f"relative-to-max error {rel} (tol {tol})"


if __name__ == "__main__":
    key = jax.random.PRNGKey(0)
    k1, k2 = jax.random.split(key)
    # Small sanity shape (batch=2, inplanes=16, 8x8).
    _run_case(k1, N=2, planes=4, H=8, W=8, tol=5e-2)
    # Realistic-channel shape (inplanes=256, 14x14) to exercise full lane fill
    # and non-multiple-of-8 spatial alignment.
    _run_case(k2, N=2, planes=64, H=14, W=14, tol=5e-2)
    print("KERNEL_OK")
</pallas_src>

<mosaic_0001>
module attributes {stable_mosaic.version = 11 : i64} {
  func.func @kernel(%arg0: i32, %arg1: memref<1x64x128xbf16, #tpu.memory_space<vmem>>, %arg2: memref<128x128xbf16, #tpu.memory_space<vmem>>, %arg3: memref<1x128xf32, #tpu.memory_space<vmem>>, %arg4: memref<3x384x128xbf16, #tpu.memory_space<vmem>>, %arg5: memref<1x128xf32, #tpu.memory_space<vmem>>, %arg6: memref<128x128xbf16, #tpu.memory_space<vmem>>, %arg7: memref<1x128xf32, #tpu.memory_space<vmem>>, %arg8: memref<1x64x128xbf16, #tpu.memory_space<vmem>>, %arg9: memref<80x384xf32, #tpu.memory_space<vmem>>) attributes {dimension_semantics = [#tpu.dimension_semantics<parallel>], iteration_bounds = array<i64: 2>, scalar_prefetch = 0 : i64, scratch_operands = 1 : i64, tpu.core_type = #tpu.core_type<tc>, window_params = [{transform_indices = @transform_0, window_bounds = array<i64: 1, 64, 128>}, {pipeline_mode = #tpu.pipeline_mode<synchronous>, transform_indices = @transform_1, window_bounds = array<i64: 128, 128>}, {pipeline_mode = #tpu.pipeline_mode<synchronous>, transform_indices = @transform_2, window_bounds = array<i64: 1, 128>}, {pipeline_mode = #tpu.pipeline_mode<synchronous>, transform_indices = @transform_3, window_bounds = array<i64: 3, 384, 128>}, {pipeline_mode = #tpu.pipeline_mode<synchronous>, transform_indices = @transform_4, window_bounds = array<i64: 1, 128>}, {pipeline_mode = #tpu.pipeline_mode<synchronous>, transform_indices = @transform_5, window_bounds = array<i64: 128, 128>}, {pipeline_mode = #tpu.pipeline_mode<synchronous>, transform_indices = @transform_6, window_bounds = array<i64: 1, 128>}, {transform_indices = @transform_7, window_bounds = array<i64: 1, 64, 128>}]} {
    %cst = arith.constant 0.000000e+00 : f32
    %0 = vector.broadcast %cst : f32 to vector<8x384xf32>
    %c0 = arith.constant 0 : index
    %c0_0 = arith.constant 0 : index
    %1 = vector.load %arg9[%c0, %c0_0] : memref<80x384xf32, #tpu.memory_space<vmem>>, vector<8x384xf32>
    tpu.vector_store %arg9[%c0, %c0_0], %0 {strides = array<i32>} : memref<80x384xf32, #tpu.memory_space<vmem>>, vector<8x384xf32>,
    %c72 = arith.constant 72 : index
    %c0_1 = arith.constant 0 : index
    %2 = vector.load %arg9[%c72, %c0_1] : memref<80x384xf32, #tpu.memory_space<vmem>>, vector<8x384xf32>
    tpu.vector_store %arg9[%c72, %c0_1], %0 {strides = array<i32>} : memref<80x384xf32, #tpu.memory_space<vmem>>, vector<8x384xf32>,
    %c0_2 = arith.constant 0 : index
    %c0_3 = arith.constant 0 : index
    %c0_4 = arith.constant 0 : index
    %3 = vector.load %arg1[%c0_2, %c0_3, %c0_4] : memref<1x64x128xbf16, #tpu.memory_space<vmem>>, vector<1x64x128xbf16>
    %4 = vector.shape_cast %3 : vector<1x64x128xbf16> to vector<64x128xbf16>
    %c0_5 = arith.constant 0 : index
    %c0_6 = arith.constant 0 : index
    %5 = vector.load %arg2[%c0_5, %c0_6] : memref<128x128xbf16, #tpu.memory_space<vmem>>, vector<128x128xbf16>
    %cst_7 = arith.constant dense<0.000000e+00> : vector<64x128xf32>
    %6 = tpu.matmul %4, %5, %cst_7 {dimension_numbers = #tpu.dot_dimension_numbers<[1], [0], [0], [1], [0, 0, 1, 1], [], []>} : vector<64x128xbf16>, vector<128x128xbf16>, vector<64x128xf32> -> vector<64x128xf32>
    %c0_8 = arith.constant 0 : index
    %c0_9 = arith.constant 0 : index
    %7 = vector.load %arg3[%c0_8, %c0_9] : memref<1x128xf32, #tpu.memory_space<vmem>>, vector<1x128xf32>
    %8 = vector.broadcast %7 : vector<1x128xf32> to vector<64x128xf32>
    %9 = arith.addf %6, %8 : vector<64x128xf32>
    %cst_10 = arith.constant 0.000000e+00 : f32
    %10 = vector.broadcast %cst_10 : f32 to vector<64x128xf32>
    %11 = arith.maximumf %9, %10 : vector<64x128xf32>
    %c8 = arith.constant 8 : index
    %c128 = arith.constant 128 : index
    %12 = vector.load %arg9[%c8, %c128] : memref<80x384xf32, #tpu.memory_space<vmem>>, vector<64x128xf32>
    tpu.vector_store %arg9[%c8, %c128], %11 {strides = array<i32>} : memref<80x384xf32, #tpu.memory_space<vmem>>, vector<64x128xf32>,
    %13 = tpu.iota {dimensions = array<i32: 0>} : vector<64x1xi32>
    %c8_i32 = arith.constant 8 : i32
    %c0_i32 = arith.constant 0 : i32
    %14 = arith.cmpi eq, %c8_i32, %c0_i32 : i32
    %c1_i32 = arith.constant 1 : i32
    %15 = arith.select %14, %c1_i32, %c8_i32 : i32
    %16 = vector.broadcast %15 : i32 to vector<64x1xi32>
    %17 = arith.remsi %13, %16 : vector<64x1xi32>
    %c0_i32_11 = arith.constant 0 : i32
    %18 = vector.broadcast %c0_i32_11 : i32 to vector<64x1xi32>
    %19 = arith.cmpi ne, %17, %18 : vector<64x1xi32>
    %c0_i32_12 = arith.constant 0 : i32
    %20 = vector.broadcast %c0_i32_12 : i32 to vector<64x1xi32>
    %21 = arith.cmpi slt, %17, %20 : vector<64x1xi32>
    %c0_i32_13 = arith.constant 0 : i32
    %22 = arith.cmpi slt, %15, %c0_i32_13 : i32
    %23 = vector.broadcast %22 : i1 to vector<64x1xi1>
    %24 = vector.broadcast %23 : vector<64x1xi1> to vector<64x1xi1>
    %25 = arith.xori %21, %24 : vector<64x1xi1>
    %26 = arith.andi %25, %19 : vector<64x1xi1>
    %27 = vector.broadcast %15 : i32 to vector<64x1xi32>
    %28 = arith.addi %17, %27 : vector<64x1xi32>
    %29 = arith.select %26, %28, %17 : vector<64x1xi1>, vector<64x1xi32>
    %c7 = arith.constant 7 : index
    %c128_14 = arith.constant 128 : index
    %30 = vector.load %arg9[%c7, %c128_14] : memref<80x384xf32, #tpu.memory_space<vmem>>, vector<64x128xf32>
    %c9 = arith.constant 9 : index
    %c128_15 = arith.constant 128 : index
    %31 = vector.load %arg9[%c9, %c128_15] : memref<80x384xf32, #tpu.memory_space<vmem>>, vector<64x128xf32>
    %c0_i32_16 = arith.constant 0 : i32
    %32 = vector.broadcast %c0_i32_16 : i32 to vector<64x1xi32>
    %33 = arith.cmpi sgt, %29, %32 : vector<64x1xi32>
    %cst_17 = arith.constant 0.000000e+00 : f32
    %34 = vector.shape_cast %33 : vector<64x1xi1> to vector<64x1xi1>
    %35 = vector.broadcast %34 : vector<64x1xi1> to vector<64x128xi1>
    %36 = vector.broadcast %cst_17 : f32 to vector<64x128xf32>
    %37 = arith.select %35, %30, %36 : vector<64x128xi1>, vector<64x128xf32>
    %c8_18 = arith.constant 8 : index
    %c0_19 = arith.constant 0 : index
    %38 = vector.load %arg9[%c8_18, %c0_19] : memref<80x384xf32, #tpu.memory_space<vmem>>, vector<64x128xf32>
    tpu.vector_store %arg9[%c8_18, %c0_19], %37 {strides = array<i32>} : memref<80x384xf32, #tpu.memory_space<vmem>>, vector<64x128xf32>,
    %c7_i32 = arith.constant 7 : i32
    %39 = vector.broadcast %c7_i32 : i32 to vector<64x1xi32>
    %40 = arith.cmpi slt, %29, %39 : vector<64x1xi32>
    %cst_20 = arith.constant 0.000000e+00 : f32
    %41 = vector.shape_cast %40 : vector<64x1xi1> to vector<64x1xi1>
    %42 = vector.broadcast %41 : vector<64x1xi1> to vector<64x128xi1>
    %43 = vector.broadcast %cst_20 : f32 to vector<64x128xf32>
    %44 = arith.select %42, %31, %43 : vector<64x128xi1>, vector<64x128xf32>
    %c8_21 = arith.constant 8 : index
    %c256 = arith.constant 256 : index
    %45 = vector.load %arg9[%c8_21, %c256] : memref<80x384xf32, #tpu.memory_space<vmem>>, vector<64x128xf32>
    tpu.vector_store %arg9[%c8_21, %c256], %44 {strides = array<i32>} : memref<80x384xf32, #tpu.memory_space<vmem>>, vector<64x128xf32>,
    %c0_22 = arith.constant 0 : index
    %c0_23 = arith.constant 0 : index
    %46 = vector.load %arg9[%c0_22, %c0_23] : memref<80x384xf32, #tpu.memory_space<vmem>>, vector<64x384xf32>
    %47 = arith.truncf %46 : vector<64x384xf32> to vector<64x384xbf16>
    %c0_24 = arith.constant 0 : index
    %c0_25 = arith.constant 0 : index
    %c0_26 = arith.constant 0 : index
    %48 = vector.load %arg4[%c0_24, %c0_25, %c0_26] : memref<3x384x128xbf16, #tpu.memory_space<vmem>>, vector<1x384x128xbf16>
    %49 = vector.shape_cast %48 : vector<1x384x128xbf16> to vector<384x128xbf16>
    %cst_27 = arith.constant dense<0.000000e+00> : vector<64x128xf32>
    %50 = tpu.matmul %47, %49, %cst_27 {dimension_numbers = #tpu.dot_dimension_numbers<[1], [0], [0], [1], [0, 0, 1, 1], [], []>} : vector<64x384xbf16>, vector<384x128xbf16>, vector<64x128xf32> -> vector<64x128xf32>
    %c8_28 = arith.constant 8 : index
    %c0_29 = arith.constant 0 : index
    %51 = vector.load %arg9[%c8_28, %c0_29] : memref<80x384xf32, #tpu.memory_space<vmem>>, vector<64x384xf32>
    %52 = arith.truncf %51 : vector<64x384xf32> to vector<64x384xbf16>
    %c1 = arith.constant 1 : index
    %c0_30 = arith.constant 0 : index
    %c0_31 = arith.constant 0 : index
    %53 = vector.load %arg4[%c1, %c0_30, %c0_31] : memref<3x384x128xbf16, #tpu.memory_space<vmem>>, vector<1x384x128xbf16>
    %54 = vector.shape_cast %53 : vector<1x384x128xbf16> to vector<384x128xbf16>
    %cst_32 = arith.constant dense<0.000000e+00> : vector<64x128xf32>
    %55 = tpu.matmul %52, %54, %cst_32 {dimension_numbers = #tpu.dot_dimension_numbers<[1], [0], [0], [1], [0, 0, 1, 1], [], []>} : vector<64x384xbf16>, vector<384x128xbf16>, vector<64x128xf32> -> vector<64x128xf32>
    %56 = arith.addf %50, %55 : vector<64x128xf32>
    %c16 = arith.constant 16 : index
    %c0_33 = arith.constant 0 : index
    %57 = vector.load %arg9[%c16, %c0_33] : memref<80x384xf32, #tpu.memory_space<vmem>>, vector<64x384xf32>
    %58 = arith.truncf %57 : vector<64x384xf32> to vector<64x384xbf16>
    %c2 = arith.constant 2 : index
    %c0_34 = arith.constant 0 : index
    %c0_35 = arith.constant 0 : index
    %59 = vector.load %arg4[%c2, %c0_34, %c0_35] : memref<3x384x128xbf16, #tpu.memory_space<vmem>>, vector<1x384x128xbf16>
    %60 = vector.shape_cast %59 : vector<1x384x128xbf16> to vector<384x128xbf16>
    %cst_36 = arith.constant dense<0.000000e+00> : vector<64x128xf32>
    %61 = tpu.matmul %58, %60, %cst_36 {dimension_numbers = #tpu.dot_dimension_numbers<[1], [0], [0], [1], [0, 0, 1, 1], [], []>} : vector<64x384xbf16>, vector<384x128xbf16>, vector<64x128xf32> -> vector<64x128xf32>
    %62 = arith.addf %56, %61 : vector<64x128xf32>
    %c0_37 = arith.constant 0 : index
    %c0_38 = arith.constant 0 : index
    %63 = vector.load %arg5[%c0_37, %c0_38] : memref<1x128xf32, #tpu.memory_space<vmem>>, vector<1x128xf32>
    %64 = vector.broadcast %63 : vector<1x128xf32> to vector<64x128xf32>
    %65 = arith.addf %62, %64 : vector<64x128xf32>
    %cst_39 = arith.constant 0.000000e+00 : f32
    %66 = vector.broadcast %cst_39 : f32 to vector<64x128xf32>
    %67 = arith.maximumf %65, %66 : vector<64x128xf32>
    %68 = arith.truncf %67 : vector<64x128xf32> to vector<64x128xbf16>
    %c0_40 = arith.constant 0 : index
    %c0_41 = arith.constant 0 : index
    %69 = vector.load %arg6[%c0_40, %c0_41] : memref<128x128xbf16, #tpu.memory_space<vmem>>, vector<128x128xbf16>
    %cst_42 = arith.constant dense<0.000000e+00> : vector<64x128xf32>
    %70 = tpu.matmul %68, %69, %cst_42 {dimension_numbers = #tpu.dot_dimension_numbers<[1], [0], [0], [1], [0, 0, 1, 1], [], []>} : vector<64x128xbf16>, vector<128x128xbf16>, vector<64x128xf32> -> vector<64x128xf32>
    %c0_43 = arith.constant 0 : index
    %c0_44 = arith.constant 0 : index
    %71 = vector.load %arg7[%c0_43, %c0_44] : memref<1x128xf32, #tpu.memory_space<vmem>>, vector<1x128xf32>
    %72 = vector.broadcast %71 : vector<1x128xf32> to vector<64x128xf32>
    %73 = arith.addf %70, %72 : vector<64x128xf32>
    %74 = arith.extf %4 : vector<64x128xbf16> to vector<64x128xf32>
    %75 = arith.addf %73, %74 : vector<64x128xf32>
    %cst_45 = arith.constant 0.000000e+00 : f32
    %76 = vector.broadcast %cst_45 : f32 to vector<64x128xf32>
    %77 = arith.maximumf %75, %76 : vector<64x128xf32>
    %78 = arith.truncf %77 : vector<64x128xf32> to vector<64x128xbf16>
    %c0_46 = arith.constant 0 : index
    %c0_47 = arith.constant 0 : index
    %c0_48 = arith.constant 0 : index
    %79 = vector.load %arg8[%c0_46, %c0_47, %c0_48] : memref<1x64x128xbf16, #tpu.memory_space<vmem>>, vector<1x64x128xbf16>
    %80 = vector.shape_cast %79 : vector<1x64x128xbf16> to vector<64x128xbf16>
    %81 = vector.shape_cast %78 : vector<64x128xbf16> to vector<1x64x128xbf16>
    tpu.vector_store %arg8[%c0_46, %c0_47, %c0_48], %81 {strides = array<i32>} : memref<1x64x128xbf16, #tpu.memory_space<vmem>>, vector<1x64x128xbf16>,
    return
  }
  func.func @transform_0(%arg0: i32) -> (i32, i32, i32) {
    %c0_i32 = arith.constant 0 : i32
    %c0_i32_0 = arith.constant 0 : i32
    %c0_i32_1 = arith.constant 0 : i32
    return %arg0, %c0_i32, %c0_i32_0 : i32, i32, i32
  }
  func.func @transform_1(%arg0: i32) -> (i32, i32) {
    %c0_i32 = arith.constant 0 : i32
    %c0_i32_0 = arith.constant 0 : i32
    %c0_i32_1 = arith.constant 0 : i32
    return %c0_i32, %c0_i32_0 : i32, i32
  }
  func.func @transform_2(%arg0: i32) -> (i32, i32) {
    %c0_i32 = arith.constant 0 : i32
    %c0_i32_0 = arith.constant 0 : i32
    %c0_i32_1 = arith.constant 0 : i32
    return %c0_i32, %c0_i32_0 : i32, i32
  }
  func.func @transform_3(%arg0: i32) -> (i32, i32, i32) {
    %c0_i32 = arith.constant 0 : i32
    %c0_i32_0 = arith.constant 0 : i32
    %c0_i32_1 = arith.constant 0 : i32
    %c0_i32_2 = arith.constant 0 : i32
    return %c0_i32, %c0_i32_0, %c0_i32_1 : i32, i32, i32
  }
  func.func @transform_4(%arg0: i32) -> (i32, i32) {
    %c0_i32 = arith.constant 0 : i32
    %c0_i32_0 = arith.constant 0 : i32
    %c0_i32_1 = arith.constant 0 : i32
    return %c0_i32, %c0_i32_0 : i32, i32
  }
  func.func @transform_5(%arg0: i32) -> (i32, i32) {
    %c0_i32 = arith.constant 0 : i32
    %c0_i32_0 = arith.constant 0 : i32
    %c0_i32_1 = arith.constant 0 : i32
    return %c0_i32, %c0_i32_0 : i32, i32
  }
  func.func @transform_6(%arg0: i32) -> (i32, i32) {
    %c0_i32 = arith.constant 0 : i32
    %c0_i32_0 = arith.constant 0 : i32
    %c0_i32_1 = arith.constant 0 : i32
    return %c0_i32, %c0_i32_0 : i32, i32
  }
  func.func @transform_7(%arg0: i32) -> (i32, i32, i32) {
    %c0_i32 = arith.constant 0 : i32
    %c0_i32_0 = arith.constant 0 : i32
    %c0_i32_1 = arith.constant 0 : i32
    return %arg0, %c0_i32, %c0_i32_0 : i32, i32, i32
  }
}

</mosaic_0001>

<llo_original>
// kernel: _lambda_.1
$region0: #{_lambda_.1}
  #allocation0 [shape = 'u32[]', space=smem, size = 0x4, offset = 0x4, fixed_abs, tag = 'smem constant byte address 0x4 - core index']
  #allocation1 [shape = 'u32[144,128]{1,0:T(1,128)}', space=vmem, size = 0x12000, scoped, tag = 'internal scratch']
  #allocation2 [shape = 'f32[80,384]{1,0:T(8,128)}', space=vmem, size = 0x1e000, scoped, tag = 'scratch operand']
  %s0 = inlined_call_operand.vmem [shape: bf16[2,64,128], index: 0, kind: input, shape index: {}]
  %s1 = inlined_call_operand.vmem [shape: bf16[128,128], index: 1, kind: input, shape index: {}]
  %s2 = inlined_call_operand.vmem [shape: f32[1,128], index: 2, kind: input, shape index: {}]
  %s3 = inlined_call_operand.hbm [shape: bf16[3,384,128], index: 3, kind: input, shape index: {}]
  %s4 = inlined_call_operand.vmem [shape: f32[1,128], index: 4, kind: input, shape index: {}]
  %s5 = inlined_call_operand.vmem [shape: bf16[128,128], index: 5, kind: input, shape index: {}]
  %s6 = inlined_call_operand.vmem [shape: f32[1,128], index: 6, kind: input, shape index: {}]
  %s7 = inlined_call_operand.vmem [shape: bf16[2,64,128], index: 7, kind: output, shape index: {}]
  %s8 = sld [smem:[#allocation0]]
  $region65: #{_lambda_.1} parent=0
    _
  %s10 = ssub.s32 1, %s8
  %s11 = scalar_select 0, %s10, %s8
  $region1: #{_lambda_.1} parent=0
    #allocation3 [shape = 'u8[294912]{0}', space=vmem, size = 0x48000, scoped, tag = 'input window, operand 3, single buffered']
    #allocation4 [shape = 's32[2]{0}', space=sflag, size = 0x8, scoped, tag = 'scoped memory for _lambda_.1']
    %12 = vsyncpa [#allocation4], 0
    loop: start=0, step=1, limit=4
    $region2: #{_lambda_.1} parent=1 // loop_pre_header
      _
    $region3: #{_lambda_.1} parent=1 // loop_header
      %s14 = sphi 0, %s18
      %p15 = scmp.ge.s32.totalorder %s14, 4
      %s24 = sphi 0, %s26
      %s27 = sphi 0, %s24
      %s28 = sphi 0, %s27
      %s44 = sphi 0, %s28
      %s48 = sphi 0, %s48
      %s50 = sphi 0, %s48
      %s51 = sphi 0, %s50
      %s65 = sphi 0, %s51
      %s69 = sphi 0, %s69
      %s71 = sphi 0, %s69
      %s72 = sphi 0, %s71
      %s86 = sphi 0, %s72
      %s90 = sphi 0, %s90
      %s92 = sphi 0, %s90
      %s93 = sphi 0, %s92
      %s107 = sphi 0, %s93
      %s111 = sphi 0, %s111
      %s113 = sphi 0, %s111
      %s114 = sphi 0, %s113
      %s128 = sphi 0, %s114
      %s132 = sphi 0, %s132
      %s134 = sphi 0, %s132
      %s135 = sphi 0, %s134
      %s149 = sphi 0, %s135
      %s153 = sphi 0, %s153
      %s155 = sphi 0, %s153
      %s156 = sphi 0, %s155
      %s170 = sphi 0, %s156
      %s176 = sphi 0, %s178
      %s179 = sphi 0, %s176
      %s180 = sphi 0, %s179
      %s196 = sphi 0, %s180
    $region4: #{_lambda_.1} parent=1 // loop_header_branch
      %17 = sbr.rel (%p15) target = $region8
    $region5: #{_lambda_.1} parent=1 // loop_body
      %s19 = ssub.s32 %s14, 1
      %s20 = ssub.s32 %s14, 2
      %s21 = sadd.s32 %s14, 1
      %s22 = ssub.s32 %s14, %s21
      %p23 = scmp.eq.s32.totalorder %s22, 0
      %s25 = sadd.s32 %s24, 1
      %s26 = scalar_select %p23, %s24, %s25
      %p29 = pneg %p23
      %p30 = scmp.eq.s32.totalorder %s14, 1
      %p31 = por %p29, %p30
      %p32 = scmp.ne.s32.totalorder %s24, %s27
      %p33 = scmp.eq.s32.totalorder %s14, 0
      %p34 = por %p32, %p33
      %p35 = scmp.ne.s32.totalorder %s24, %s27
      %p36 = scmp.eq.s32.totalorder %s19, 1
      %p37 = por %p35, %p36
      %p38 = scmp.ne.s32.totalorder %s27, %s28
      %p39 = scmp.eq.s32.totalorder %s19, 0
      %p40 = por %p38, %p39
      %p41 = scmp.ne.s32.totalorder %s27, %s28
      %p42 = scmp.eq.s32.totalorder %s20, 1
      %p43 = por %p41, %p42
      %p45 = scmp.ne.s32.totalorder %s28, %s44
      %p46 = scmp.eq.s32.totalorder %s20, 0
      %p47 = por %p45, %p46
      %s49 = sadd.s32 %s48, 1
      %p52 = scmp.eq.s32.totalorder %s14, 1
      %p53 = scmp.ne.s32.totalorder %s48, %s50
      %p54 = scmp.eq.s32.totalorder %s14, 0
      %p55 = por %p53, %p54
      %p56 = scmp.ne.s32.totalorder %s48, %s50
      %p57 = scmp.eq.s32.totalorder %s19, 1
      %p58 = por %p56, %p57
      %p59 = scmp.ne.s32.totalorder %s50, %s51
      %p60 = scmp.eq.s32.totalorder %s19, 0
      %p61 = por %p59, %p60
      %p62 = scmp.ne.s32.totalorder %s50, %s51
      %p63 = scmp.eq.s32.totalorder %s20, 1
      %p64 = por %p62, %p63
      %p66 = scmp.ne.s32.totalorder %s51, %s65
      %p67 = scmp.eq.s32.totalorder %s20, 0
      %p68 = por %p66, %p67
      %s70 = sadd.s32 %s69, 1
      %p73 = scmp.eq.s32.totalorder %s14, 1
      %p74 = scmp.ne.s32.totalorder %s69, %s71
      %p75 = scmp.eq.s32.totalorder %s14, 0
      %p76 = por %p74, %p75
      %p77 = scmp.ne.s32.totalorder %s69, %s71
      %p78 = scmp.eq.s32.totalorder %s19, 1
      %p79 = por %p77, %p78
      %p80 = scmp.ne.s32.totalorder %s71, %s72
      %p81 = scmp.eq.s32.totalorder %s19, 0
      %p82 = por %p80, %p81
      %p83 = scmp.ne.s32.totalorder %s71, %s72
      %p84 = scmp.eq.s32.totalorder %s20, 1
      %p85 = por %p83, %p84
      %p87 = scmp.ne.s32.totalorder %s72, %s86
      %p88 = scmp.eq.s32.totalorder %s20, 0
      %p89 = por %p87, %p88
      %s91 = sadd.s32 %s90, 1
      %p94 = scmp.eq.s32.totalorder %s14, 1
      %p95 = scmp.ne.s32.totalorder %s90, %s92
      %p96 = scmp.eq.s32.totalorder %s14, 0
      %p97 = por %p95, %p96
      %p98 = scmp.ne.s32.totalorder %s90, %s92
      %p99 = scmp.eq.s32.totalorder %s19, 1
      %p100 = por %p98, %p99
      %p101 = scmp.ne.s32.totalorder %s92, %s93
      %p102 = scmp.eq.s32.totalorder %s19, 0
      %p103 = por %p101, %p102
      %p104 = scmp.ne.s32.totalorder %s92, %s93
      %p105 = scmp.eq.s32.totalorder %s20, 1
      %p106 = por %p104, %p105
      %p108 = scmp.ne.s32.totalorder %s93, %s107
      %p109 = scmp.eq.s32.totalorder %s20, 0
      %p110 = por %p108, %p109
      %s112 = sadd.s32 %s111, 1
      %p115 = scmp.eq.s32.totalorder %s14, 1
      %p116 = scmp.ne.s32.totalorder %s111, %s113
      %p117 = scmp.eq.s32.totalorder %s14, 0
      %p118 = por %p116, %p117
      %p119 = scmp.ne.s32.totalorder %s111, %s113
      %p120 = scmp.eq.s32.totalorder %s19, 1
      %p121 = por %p119, %p120
      %p122 = scmp.ne.s32.totalorder %s113, %s114
      %p123 = scmp.eq.s32.totalorder %s19, 0
      %p124 = por %p122, %p123
      %p125 = scmp.ne.s32.totalorder %s113, %s114
      %p126 = scmp.eq.s32.totalorder %s20, 1
      %p127 = por %p125, %p126
      %p129 = scmp.ne.s32.totalorder %s114, %s128
      %p130 = scmp.eq.s32.totalorder %s20, 0
      %p131 = por %p129, %p130
      %s133 = sadd.s32 %s132, 1
      %p136 = scmp.eq.s32.totalorder %s14, 1
      %p137 = scmp.ne.s32.totalorder %s132, %s134
      %p138 = scmp.eq.s32.totalorder %s14, 0
      %p139 = por %p137, %p138
      %p140 = scmp.ne.s32.totalorder %s132, %s134
      %p141 = scmp.eq.s32.totalorder %s19, 1
      %p142 = por %p140, %p141
      %p143 = scmp.ne.s32.totalorder %s134, %s135
      %p144 = scmp.eq.s32.totalorder %s19, 0
      %p145 = por %p143, %p144
      %p146 = scmp.ne.s32.totalorder %s134, %s135
      %p147 = scmp.eq.s32.totalorder %s20, 1
      %p148 = por %p146, %p147
      %p150 = scmp.ne.s32.totalorder %s135, %s149
      %p151 = scmp.eq.s32.totalorder %s20, 0
      %p152 = por %p150, %p151
      %s154 = sadd.s32 %s153, 1
      %p157 = scmp.eq.s32.totalorder %s14, 1
      %p158 = scmp.ne.s32.totalorder %s153, %s155
      %p159 = scmp.eq.s32.totalorder %s14, 0
      %p160 = por %p158, %p159
      %p161 = scmp.ne.s32.totalorder %s153, %s155
      %p162 = scmp.eq.s32.totalorder %s19, 1
      %p163 = por %p161, %p162
      %p164 = scmp.ne.s32.totalorder %s155, %s156
      %p165 = scmp.eq.s32.totalorder %s19, 0
      %p166 = por %p164, %p165
      %p167 = scmp.ne.s32.totalorder %s155, %s156
      %p168 = scmp.eq.s32.totalorder %s20, 1
      %p169 = por %p167, %p168
      %p171 = scmp.ne.s32.totalorder %s156, %s170
      %p172 = scmp.eq.s32.totalorder %s20, 0
      %p173 = por %p171, %p172
      %s174 = ssub.s32 %s14, %s21
      %p175 = scmp.eq.s32.totalorder %s174, 0
      %s177 = sadd.s32 %s176, 1
      %s178 = scalar_select %p175, %s176, %s177
      %p181 = pneg %p175
      %p182 = scmp.eq.s32.totalorder %s14, 1
      %p183 = por %p181, %p182
      %p184 = scmp.ne.s32.totalorder %s176, %s179
      %p185 = scmp.eq.s32.totalorder %s14, 0
      %p186 = por %p184, %p185
      %p187 = scmp.ne.s32.totalorder %s176, %s179
      %p188 = scmp.eq.s32.totalorder %s19, 1
      %p189 = por %p187, %p188
      %p190 = scmp.ne.s32.totalorder %s179, %s180
      %p191 = scmp.eq.s32.totalorder %s19, 0
      %p192 = por %p190, %p191
      %p193 = scmp.ne.s32.totalorder %s179, %s180
      %p194 = scmp.eq.s32.totalorder %s20, 1
      %p195 = por %p193, %p194
      %p197 = scmp.ne.s32.totalorder %s180, %s196
      %p198 = scmp.eq.s32.totalorder %s20, 0
      %p199 = por %p197, %p198
      %p200 = scmp.le.s32.totalorder 1, %s14
      %p201 = scmp.lt.s32.totalorder %s14, 3
      %p202 = pnand %p200, %p201
      %p203 = pneg %p202
      // Predicated region
      $region9: #{_lambda_.1} parent=5 // pred_check
        _
      $region10: #{_lambda_.1} parent=5 // pred_check_branch
        %205 = sbr.rel (%p202) target = $region12
      $region11: #{_lambda_.1} parent=5 // pred_region
        %s206 = ssub.s32 %s14, 1
        // Predicated region
        $region13: #{_lambda_.1} parent=11 // pred_check
          %p207 = pneg %p61
        $region14: #{_lambda_.1} parent=11 // pred_check_branch
          %209 = sbr.rel (%p207) target = $region16
        $region15: #{_lambda_.1} parent=11 // pred_region
          _
        $region16: #{_lambda_.1} parent=11 // pred_fallthru
          _
        // Predicated region
        $region17: #{_lambda_.1} parent=11 // pred_check
          %p210 = pneg %p82
        $region18: #{_lambda_.1} parent=11 // pred_check_branch
          %212 = sbr.rel (%p210) target = $region20
        $region19: #{_lambda_.1} parent=11 // pred_region
          _
        $region20: #{_lambda_.1} parent=11 // pred_fallthru
          _
        // Predicated region
        $region21: #{_lambda_.1} parent=11 // pred_check
          %p213 = pneg %p103
        $region22: #{_lambda_.1} parent=11 // pred_check_branch
          %215 = sbr.rel (%p213) target = $region24
        $region23: #{_lambda_.1} parent=11 // pred_region
          %s217 = ssub.s32 9216, 9216
          %218 = vsyncadd [#allocation4], %s217
          %s219 = sshll.u32 [#allocation3], 4
          %s220 = int_to_ptr.vmem [resolvable:$true] %s219
          %225 = dma.hbm_to_vmem [thread:$0]  %s3, 9216, %s220, [#allocation4], 64, 64, 4
        $region24: #{_lambda_.1} parent=11 // pred_fallthru
          _
        // Predicated region
        $region25: #{_lambda_.1} parent=11 // pred_check
          %p226 = pneg %p124
        $region26: #{_lambda_.1} parent=11 // pred_check_branch
          %228 = sbr.rel (%p226) target = $region28
        $region27: #{_lambda_.1} parent=11 // pred_region
          _
        $region28: #{_lambda_.1} parent=11 // pred_fallthru
          _
        // Predicated region
        $region29: #{_lambda_.1} parent=11 // pred_check
          %p229 = pneg %p145
        $region30: #{_lambda_.1} parent=11 // pred_check_branch
          %231 = sbr.rel (%p229) target = $region32
        $region31: #{_lambda_.1} parent=11 // pred_region
          _
        $region32: #{_lambda_.1} parent=11 // pred_fallthru
          _
        // Predicated region
        $region33: #{_lambda_.1} parent=11 // pred_check
          %p232 = pneg %p166
        $region34: #{_lambda_.1} parent=11 // pred_check_branch
          %234 = sbr.rel (%p232) target = $region36
        $region35: #{_lambda_.1} parent=11 // pred_region
          _
        $region36: #{_lambda_.1} parent=11 // pred_fallthru
          _
      $region12: #{_lambda_.1} parent=5 // pred_fallthru
        _
      %p235 = scmp.lt.s32.totalorder %s14, 2
      // Predicated region
      $region37: #{_lambda_.1} parent=5 // pred_check
        %p236 = pneg %p235
      $region38: #{_lambda_.1} parent=5 // pred_check_branch
        %238 = sbr.rel (%p236) target = $region40
      $region39: #{_lambda_.1} parent=5 // pred_region
        // Predicated region
        $region41: #{_lambda_.1} parent=39 // pred_check
          %p239 = pneg %p34
        $region42: #{_lambda_.1} parent=39 // pred_check_branch
          %241 = sbr.rel (%p239) target = $region44
        $region43: #{_lambda_.1} parent=39 // pred_region
          %p242 = scmp.lt.s32.totalorder %s14, 1
          %s243 = scalar_select %p242, %s14, 1
          %s244 = smul.addr %s243, 8
          %s245 = smul.addr %s244, 4
          %s246 = scalar_lea.vmem %s0, %s245
        $region44: #{_lambda_.1} parent=39 // pred_fallthru
          _
      $region40: #{_lambda_.1} parent=5 // pred_fallthru
        _
      %p247 = scmp.le.s32.totalorder 1, %s14
      %p248 = scmp.lt.s32.totalorder %s14, 3
      %p249 = pnand %p247, %p248
      %p250 = pneg %p249
      // Predicated region
      $region45: #{_lambda_.1} parent=5 // pred_check
        _
      $region46: #{_lambda_.1} parent=5 // pred_check_branch
        %252 = sbr.rel (%p249) target = $region48
      $region47: #{_lambda_.1} parent=5 // pred_region
        %s253 = ssub.s32 %s14, 1
        // Predicated region
        $region49: #{_lambda_.1} parent=47 // pred_check
          %p254 = pneg %p103
        $region50: #{_lambda_.1} parent=47 // pred_check_branch
          %256 = sbr.rel (%p254) target = $region52
        $region51: #{_lambda_.1} parent=47 // pred_region
          %257 = dma.done [#allocation4], 9216
        $region52: #{_lambda_.1} parent=47 // pred_fallthru
          _
        %p258 = scmp.lt.s32.totalorder %s19, 1
        %s259 = scalar_select %p258, %s19, 1
        %s260 = smul.addr %s259, 8
        %s261 = smul.addr %s260, 4
        %s262 = scalar_lea.vmem %s0, %s261
        %p263 = pneg %p40
        %p264 = pneg %p37
        %p265 = pneg %p61
        %p266 = pneg %p58
        %p267 = pneg %p82
        %p268 = pneg %p79
        %p269 = pneg %p103
        %p270 = pneg %p100
        %p271 = pneg %p124
        %p272 = pneg %p121
        %p273 = pneg %p145
        %p274 = pneg %p142
        %p275 = pneg %p166
        %p276 = pneg %p163
        %p277 = pneg %p192
        %p278 = pneg %p189
        %p279 = scmp.lt.s32.totalorder %s19, 1
        %s280 = scalar_select %p279, %s19, 1
        %s281 = smul.addr %s280, 8
        %s282 = smul.addr %s281, 4
        %s283 = scalar_lea.vmem %s7, %s282
        %p284 = scmp.lt.s32.totalorder %s19, 1
        %s285 = scalar_select %p284, %s19, 1
        %s286 = smul.addr %s285, 8
        %s287 = smul.addr %s286, 4
        %s288 = scalar_lea.vmem %s0, %s287
        %p289 = scmp.lt.s32.totalorder %s19, 1
        %s290 = scalar_select %p289, %s19, 1
        %s291 = smul.addr %s290, 8
        %s292 = smul.addr %s291, 4
        %s293 = scalar_lea.vmem %s7, %s292
        %295 = vst [vmem:[#allocation2] sm:$0xff] 0.0
        %296 = vst [vmem:[#allocation2 + $0x8] sm:$0xff] 0.0
        %297 = vst [vmem:[#allocation2 + $0x10] sm:$0xff] 0.0
        %298 = vst [vmem:[#allocation2 + $0xd8] sm:$0xff] 0.0
        %299 = vst [vmem:[#allocation2 + $0xe0] sm:$0xff] 0.0
        %300 = vst [vmem:[#allocation2 + $0xe8] sm:$0xff] 0.0
        %v301 = vld [vmem:[%s288] sm:$0xf]
        %v302 = vld [vmem:[%s288 + $0x4] sm:$0xf]
        %v303 = vld [vmem:[%s288 + $0x8] sm:$0xf]
        %v304 = vld [vmem:[%s288 + $0xc] sm:$0xf]
        %v305 = vld [vmem:[%s288 + $0x10] sm:$0xf]
        %v306 = vld [vmem:[%s288 + $0x14] sm:$0xf]
        %v307 = vld [vmem:[%s288 + $0x18] sm:$0xf]
        %v308 = vld [vmem:[%s288 + $0x1c] sm:$0xf]
        %v309 = vld [vmem:[%s1] sm:$0xf]
        %v310 = vld [vmem:[%s1 + $0x4] sm:$0xf]
        %v311 = vld [vmem:[%s1 + $0x8] sm:$0xf]
        %v312 = vld [vmem:[%s1 + $0xc] sm:$0xf]
        %v313 = vld [vmem:[%s1 + $0x10] sm:$0xf]
        %v314 = vld [vmem:[%s1 + $0x14] sm:$0xf]
        %v315 = vld [vmem:[%s1 + $0x18] sm:$0xf]
        %v316 = vld [vmem:[%s1 + $0x1c] sm:$0xf]
        %v317 = vld [vmem:[%s1 + $0x20] sm:$0xf]
        %v318 = vld [vmem:[%s1 + $0x24] sm:$0xf]
        %v319 = vld [vmem:[%s1 + $0x28] sm:$0xf]
        %v320 = vld [vmem:[%s1 + $0x2c] sm:$0xf]
        %v321 = vld [vmem:[%s1 + $0x30] sm:$0xf]
        %v322 = vld [vmem:[%s1 + $0x34] sm:$0xf]
        %v323 = vld [vmem:[%s1 + $0x38] sm:$0xf]
        %v324 = vld [vmem:[%s1 + $0x3c] sm:$0xf]
        %v325 = vld [vmem:[%s2] sm:$0x1]
        %v327 = vlaneseq
        %v328 = vshrl.u32 %v327, 7
        %v329 = vsub.s32 0, %v328
        %v330 = vrot.slane %v325, %v329
        %v340 = vunpack.c.l.b16 %v301
        %v341 = vunpack.c.l.b16 %v302
        %v342 = vunpack.c.l.b16 %v303
        %v343 = vunpack.c.l.b16 %v304
        %v344 = vunpack.c.l.b16 %v305
        %v345 = vunpack.c.l.b16 %v306
        %v346 = vunpack.c.l.b16 %v307
        %v347 = vunpack.c.l.b16 %v308
        %v348 = vpack.c.b16 %v341, %v340
        %v349 = vpack.c.b16 %v343, %v342
        %v350 = vpack.c.b16 %v345, %v344
        %v351 = vpack.c.b16 %v347, %v346
        %v372 = vunpack.c.l.b16 %v309
        %v373 = vunpack.c.l.b16 %v310
        %v374 = vunpack.c.l.b16 %v311
        %v375 = vunpack.c.l.b16 %v312
        %v376 = vunpack.c.l.b16 %v313
        %v377 = vunpack.c.l.b16 %v314
        %v378 = vunpack.c.l.b16 %v315
        %v379 = vunpack.c.l.b16 %v316
        %v380 = vunpack.c.l.b16 %v317
        %v381 = vunpack.c.l.b16 %v318
        %v382 = vunpack.c.l.b16 %v319
        %v383 = vunpack.c.l.b16 %v320
        %v384 = vunpack.c.l.b16 %v321
        %v385 = vunpack.c.l.b16 %v322
        %v386 = vunpack.c.l.b16 %v323
        %v387 = vunpack.c.l.b16 %v324
        %v388 = vpack.c.b16 %v373, %v372
        %v389 = vpack.c.b16 %v375, %v374
        %v390 = vpack.c.b16 %v377, %v376
        %v391 = vpack.c.b16 %v379, %v378
        %v392 = vpack.c.b16 %v381, %v380
        %v393 = vpack.c.b16 %v383, %v382
        %v394 = vpack.c.b16 %v385, %v384
        %v395 = vpack.c.b16 %v387, %v386
        %404 = vmatprep.subr.bf16.mxu0 0
        %405 = vmatpush1.bf16.msra.mxu0 %v388
        %406 = vmatprep.subr.bf16.mxu0 0
        %407 = vmatpush1.bf16.msra.mxu0 %v389
        %408 = vmatprep.subr.bf16.mxu0 0
        %409 = vmatpush1.bf16.msra.mxu0 %v390
        %410 = vmatprep.subr.bf16.mxu0 0
        %411 = vmatpush1.bf16.msra.mxu0 %v391
        %412 = vmatprep.subr.bf16.mxu0 0
        %413 = vmatpush1.bf16.msra.mxu0 %v392
        %414 = vmatprep.subr.bf16.mxu0 0
        %415 = vmatpush1.bf16.msra.mxu0 %v393
        %416 = vmatprep.subr.bf16.mxu0 0
        %417 = vmatpush1.bf16.msra.mxu0 %v394
        %418 = vmatprep.subr.bf16.mxu0 0
        %419 = vmatpush1.bf16.msra.mxu0 %v395
        %420 = vmatprep.subr.bf16.mxu0 0
        %421 = vmatpush1.bf16.msra.mxu0 0
        %422 = vmatprep.subr.bf16.mxu0 0
        %423 = vmatpush1.bf16.msra.mxu0 0
        %424 = vmatprep.subr.bf16.mxu0 0
        %425 = vmatpush1.bf16.msra.mxu0 0
        %426 = vmatprep.subr.bf16.mxu0 0
        %427 = vmatpush1.bf16.msra.mxu0 0
        %428 = vmatprep.subr.bf16.mxu0 0
        %429 = vmatpush1.bf16.msra.mxu0 0
        %430 = vmatprep.subr.bf16.mxu0 0
        %431 = vmatpush1.bf16.msra.mxu0 0
        %432 = vmatprep.subr.bf16.mxu0 0
        %433 = vmatpush1.bf16.msra.mxu0 0
        %434 = vmatprep.subr.bf16.mxu0 0
        %435 = vmatpush1.bf16.msra.mxu0 0
        %436 = vmatprep.mubr.bf16.mxu0 0
        %437 = vmatmul.mubr.bf16.gmra.mrb[0].mxu0 %v348
        %v438 = vpop.f32.mrb[0].mxu0
        %v439 = vadd.f32 %v330, %v438
        %v440 = vpop.f32.mrb[0].mxu0
        %v441 = vpop.f32.mrb[0].mxu0
        %v442 = vadd.f32 %v330, %v441
        %v443 = vpop.f32.mrb[0].mxu0
        %444 = vmatprep.mubr.bf16.mxu0 0
        %445 = vmatmul.mubr.bf16.gmra.mrb[0].mxu0 %v349
        %v446 = vpop.f32.mrb[0].mxu0
        %v447 = vadd.f32 %v330, %v446
        %v448 = vpop.f32.mrb[0].mxu0
        %v449 = vpop.f32.mrb[0].mxu0
        %v450 = vadd.f32 %v330, %v449
        %v451 = vpop.f32.mrb[0].mxu0
        %452 = vmatprep.mubr.bf16.mxu0 0
        %453 = vmatmul.mubr.bf16.gmra.mrb[0].mxu0 %v350
        %v454 = vpop.f32.mrb[0].mxu0
        %v455 = vadd.f32 %v330, %v454
        %v456 = vpop.f32.mrb[0].mxu0
        %v457 = vpop.f32.mrb[0].mxu0
        %v458 = vadd.f32 %v330, %v457
        %v459 = vpop.f32.mrb[0].mxu0
        %460 = vmatprep.mubr.bf16.mxu0 0
        %461 = vmatmul.mubr.bf16.gmra.mrb[0].mxu0 %v351
        %v462 = vpop.f32.mrb[0].mxu0
        %v463 = vadd.f32 %v330, %v462
        %v464 = vpop.f32.mrb[0].mxu0
        %v465 = vpop.f32.mrb[0].mxu0
        %v466 = vadd.f32 %v330, %v465
        %v467 = vpop.f32.mrb[0].mxu0
        %468 = vdwg.mxu0
        %v469 = vmax.f32 %v439, 0.0
        %v470 = vmax.f32 %v442, 0.0
        %v471 = vmax.f32 %v447, 0.0
        %v472 = vmax.f32 %v450, 0.0
        %v473 = vmax.f32 %v455, 0.0
        %v474 = vmax.f32 %v458, 0.0
        %v475 = vmax.f32 %v463, 0.0
        %v476 = vmax.f32 %v466, 0.0
        %477 = vst [vmem:[#allocation2 + $0x20] sm:$0xff] %v469
        %478 = vst [vmem:[#allocation2 + $0x38] sm:$0xff] %v470
        %479 = vst [vmem:[#allocation2 + $0x50] sm:$0xff] %v471
        %480 = vst [vmem:[#allocation2 + $0x68] sm:$0xff] %v472
        %481 = vst [vmem:[#allocation2 + $0x80] sm:$0xff] %v473
        %482 = vst [vmem:[#allocation2 + $0x98] sm:$0xff] %v474
        %483 = vst [vmem:[#allocation2 + $0xb0] sm:$0xff] %v475
        %484 = vst [vmem:[#allocation2 + $0xc8] sm:$0xff] %v476
        %v485 = vlaneseq
        %v486 = vshrl.u32 %v485, 7
        %v487 = vadd.s32 %v486, 8
        %v488 = vadd.s32 %v486, 16
        %v489 = vadd.s32 %v486, 24
        %v490 = vadd.s32 %v486, 32
        %v491 = vadd.s32 %v486, 40
        %v492 = vadd.s32 %v486, 48
        %v493 = vadd.s32 %v486, 56
        %vm494 = vcmp.lt.s32.totalorder %v486, 0
        %v495 = vsub.s32 0, %v486
        %v496 = vsel %vm494, %v495, %v486
        %v497 = vshrl.u32 %v496, 3
        %v498 = vand.u32 %v496, 7
        %v499 = vsub.s32 0, %v498
        %v500 = vsel %vm494, %v499, %v498
        %vm501 = vcmp.lt.s32.totalorder %v487, 0
        %v502 = vsub.s32 0, %v487
        %v503 = vsel %vm501, %v502, %v487
        %v504 = vshrl.u32 %v503, 3
        %v505 = vand.u32 %v503, 7
        %v506 = vsub.s32 0, %v505
        %v507 = vsel %vm501, %v506, %v505
        %vm508 = vcmp.lt.s32.totalorder %v488, 0
        %v509 = vsub.s32 0, %v488
        %v510 = vsel %vm508, %v509, %v488
        %v511 = vshrl.u32 %v510, 3
        %v512 = vand.u32 %v510, 7
        %v513 = vsub.s32 0, %v512
        %v514 = vsel %vm508, %v513, %v512
        %vm515 = vcmp.lt.s32.totalorder %v489, 0
        %v516 = vsub.s32 0, %v489
        %v517 = vsel %vm515, %v516, %v489
        %v518 = vshrl.u32 %v517, 3
        %v519 = vand.u32 %v517, 7
        %v520 = vsub.s32 0, %v519
        %v521 = vsel %vm515, %v520, %v519
        %vm522 = vcmp.lt.s32.totalorder %v490, 0
        %v523 = vsub.s32 0, %v490
        %v524 = vsel %vm522, %v523, %v490
        %v525 = vshrl.u32 %v524, 3
        %v526 = vand.u32 %v524, 7
        %v527 = vsub.s32 0, %v526
        %v528 = vsel %vm522, %v527, %v526
        %vm529 = vcmp.lt.s32.totalorder %v491, 0
        %v530 = vsub.s32 0, %v491
        %v531 = vsel %vm529, %v530, %v491
        %v532 = vshrl.u32 %v531, 3
        %v533 = vand.u32 %v531, 7
        %v534 = vsub.s32 0, %v533
        %v535 = vsel %vm529, %v534, %v533
        %vm536 = vcmp.lt.s32.totalorder %v492, 0
        %v537 = vsub.s32 0, %v492
        %v538 = vsel %vm536, %v537, %v492
        %v539 = vshrl.u32 %v538, 3
        %v540 = vand.u32 %v538, 7
        %v541 = vsub.s32 0, %v540
        %v542 = vsel %vm536, %v541, %v540
        %vm543 = vcmp.lt.s32.totalorder %v493, 0
        %v544 = vsub.s32 0, %v493
        %v545 = vsel %vm543, %v544, %v493
        %v546 = vshrl.u32 %v545, 3
        %v547 = vand.u32 %v545, 7
        %v548 = vsub.s32 0, %v547
        %v549 = vsel %vm543, %v548, %v547
        %vm550 = vcmp.ne.s32.totalorder %v500, 0
        %vm551 = vcmp.ne.s32.totalorder %v507, 0
        %vm552 = vcmp.ne.s32.totalorder %v514, 0
        %vm553 = vcmp.ne.s32.totalorder %v521, 0
        %vm554 = vcmp.ne.s32.totalorder %v528, 0
        %vm555 = vcmp.ne.s32.totalorder %v535, 0
        %vm556 = vcmp.ne.s32.totalorder %v542, 0
        %vm557 = vcmp.ne.s32.totalorder %v549, 0
        %vm558 = vcmp.lt.s32.totalorder %v500, 0
        %vm559 = vcmp.lt.s32.totalorder %v507, 0
        %vm560 = vcmp.lt.s32.totalorder %v514, 0
        %vm561 = vcmp.lt.s32.totalorder %v521, 0
        %vm562 = vcmp.lt.s32.totalorder %v528, 0
        %vm563 = vcmp.lt.s32.totalorder %v535, 0
        %vm564 = vcmp.lt.s32.totalorder %v542, 0
        %vm565 = vcmp.lt.s32.totalorder %v549, 0
        %vm566 = vmand %vm558, %vm550
        %vm567 = vmand %vm559, %vm551
        %vm568 = vmand %vm560, %vm552
        %vm569 = vmand %vm561, %vm553
        %vm570 = vmand %vm562, %vm554
        %vm571 = vmand %vm563, %vm555
        %vm572 = vmand %vm564, %vm556
        %vm573 = vmand %vm565, %vm557
        %v574 = vadd.s32 %v500, 8
        %v575 = vadd.s32 %v507, 8
        %v576 = vadd.s32 %v514, 8
        %v577 = vadd.s32 %v521, 8
        %v578 = vadd.s32 %v528, 8
        %v579 = vadd.s32 %v535, 8
        %v580 = vadd.s32 %v542, 8
        %v581 = vadd.s32 %v549, 8
        %v582 = vsel %vm566, %v574, %v500
        %v583 = vsel %vm567, %v575, %v507
        %v584 = vsel %vm568, %v576, %v514
        %v585 = vsel %vm569, %v577, %v521
        %v586 = vsel %vm570, %v578, %v528
        %v587 = vsel %vm571, %v579, %v535
        %v588 = vsel %vm572, %v580, %v542
        %v589 = vsel %vm573, %v581, %v549
        %v590 = vld [vmem:[#allocation2 + $0x8] sm:$0x80]
        %v591 = vld [vmem:[#allocation2 + $0x20] sm:$0xff]
        %v592 = vld [vmem:[#allocation2 + $0x38] sm:$0xff]
        %v593 = vld [vmem:[#allocation2 + $0x50] sm:$0xff]
        %v594 = vld [vmem:[#allocation2 + $0x68] sm:$0xff]
        %v595 = vld [vmem:[#allocation2 + $0x80] sm:$0xff]
        %v596 = vld [vmem:[#allocation2 + $0x98] sm:$0xff]
        %v597 = vld [vmem:[#allocation2 + $0xb0] sm:$0xff]
        %v598 = vld [vmem:[#allocation2 + $0xc8] sm:$0x7f]
        %v599 = vld [vmem:[#allocation2 + $0x20] sm:$0xfe]
        %v600 = vld [vmem:[#allocation2 + $0xc8] sm:$0xff]
        %v601 = vld [vmem:[#allocation2 + $0xe0] sm:$0x1]
        %vm602 = vcmp.gt.s32.totalorder %v582, 0
        %vm603 = vcmp.gt.s32.totalorder %v583, 0
        %vm604 = vcmp.gt.s32.totalorder %v584, 0
        %vm605 = vcmp.gt.s32.totalorder %v585, 0
        %vm606 = vcmp.gt.s32.totalorder %v586, 0
        %vm607 = vcmp.gt.s32.totalorder %v587, 0
        %vm608 = vcmp.gt.s32.totalorder %v588, 0
        %vm609 = vcmp.gt.s32.totalorder %v589, 0
        %v610 = vsel %vm602, 1, 0
        %v611 = vsel %vm603, 1, 0
        %v612 = vsel %vm604, 1, 0
        %v613 = vsel %vm605, 1, 0
        %v614 = vsel %vm606, 1, 0
        %v615 = vsel %vm607, 1, 0
        %v616 = vsel %vm608, 1, 0
        %v617 = vsel %vm609, 1, 0
        %vm618 = vcmp.eq.s32.totalorder %v610, 1
        %vm619 = vcmp.eq.s32.totalorder %v611, 1
        %vm620 = vcmp.eq.s32.totalorder %v612, 1
        %vm621 = vcmp.eq.s32.totalorder %v613, 1
        %vm622 = vcmp.eq.s32.totalorder %v614, 1
        %vm623 = vcmp.eq.s32.totalorder %v615, 1
        %vm624 = vcmp.eq.s32.totalorder %v616, 1
        %vm625 = vcmp.eq.s32.totalorder %v617, 1
        %vm635 = vcmask 1040384
        %v636 = vrot.slane %v590, 7
        %v637 = vrot.slane %v591, 7
        %v638 = vsel %vm635, %v636, %v637
        %v639 = vrot.slane %v592, 7
        %v640 = vsel %vm635, %v637, %v639
        %v641 = vrot.slane %v593, 7
        %v642 = vsel %vm635, %v639, %v641
        %v643 = vrot.slane %v594, 7
        %v644 = vsel %vm635, %v641, %v643
        %v645 = vrot.slane %v595, 7
        %v646 = vsel %vm635, %v643, %v645
        %v647 = vrot.slane %v596, 7
        %v648 = vsel %vm635, %v645, %v647
        %v649 = vrot.slane %v597, 7
        %v650 = vsel %vm635, %v647, %v649
        %v651 = vrot.slane %v598, 7
        %v652 = vsel %vm635, %v649, %v651
        %v661 = vsel %vm618, %v638, 0.0
        %v662 = vsel %vm619, %v640, 0.0
        %v663 = vsel %vm620, %v642, 0.0
        %v664 = vsel %vm621, %v644, 0.0
        %v665 = vsel %vm622, %v646, 0.0
        %v666 = vsel %vm623, %v648, 0.0
        %v667 = vsel %vm624, %v650, 0.0
        %v668 = vsel %vm625, %v652, 0.0
        %669 = vst [vmem:[#allocation2 + $0x18] sm:$0xff] %v661
        %670 = vst [vmem:[#allocation2 + $0x30] sm:$0xff] %v662
        %671 = vst [vmem:[#allocation2 + $0x48] sm:$0xff] %v663
        %672 = vst [vmem:[#allocation2 + $0x60] sm:$0xff] %v664
        %673 = vst [vmem:[#allocation2 + $0x78] sm:$0xff] %v665
        %674 = vst [vmem:[#allocation2 + $0x90] sm:$0xff] %v666
        %675 = vst [vmem:[#allocation2 + $0xa8] sm:$0xff] %v667
        %676 = vst [vmem:[#allocation2 + $0xc0] sm:$0xff] %v668
        %vm677 = vcmp.lt.s32.totalorder %v582, 7
        %vm678 = vcmp.lt.s32.totalorder %v583, 7
        %vm679 = vcmp.lt.s32.totalorder %v584, 7
        %vm680 = vcmp.lt.s32.totalorder %v585, 7
        %vm681 = vcmp.lt.s32.totalorder %v586, 7
        %vm682 = vcmp.lt.s32.totalorder %v587, 7
        %vm683 = vcmp.lt.s32.totalorder %v588, 7
        %vm684 = vcmp.lt.s32.totalorder %v589, 7
        %v685 = vsel %vm677, 1, 0
        %v686 = vsel %vm678, 1, 0
        %v687 = vsel %vm679, 1, 0
        %v688 = vsel %vm680, 1, 0
        %v689 = vsel %vm681, 1, 0
        %v690 = vsel %vm682, 1, 0
        %v691 = vsel %vm683, 1, 0
        %v692 = vsel %vm684, 1, 0
        %vm693 = vcmp.eq.s32.totalorder %v685, 1
        %vm694 = vcmp.eq.s32.totalorder %v686, 1
        %vm695 = vcmp.eq.s32.totalorder %v687, 1
        %vm696 = vcmp.eq.s32.totalorder %v688, 1
        %vm697 = vcmp.eq.s32.totalorder %v689, 1
        %vm698 = vcmp.eq.s32.totalorder %v690, 1
        %vm699 = vcmp.eq.s32.totalorder %v691, 1
        %vm700 = vcmp.eq.s32.totalorder %v692, 1
        %vm704 = vcmask 1046528
        %v705 = vrot.slane %v599, 1
        %v706 = vrot.slane %v592, 1
        %v707 = vsel %vm704, %v705, %v706
        %v708 = vrot.slane %v593, 1
        %v709 = vsel %vm704, %v706, %v708
        %v710 = vrot.slane %v594, 1
        %v711 = vsel %vm704, %v708, %v710
        %v712 = vrot.slane %v595, 1
        %v713 = vsel %vm704, %v710, %v712
        %v714 = vrot.slane %v596, 1
        %v715 = vsel %vm704, %v712, %v714
        %v716 = vrot.slane %v597, 1
        %v717 = vsel %vm704, %v714, %v716
        %v718 = vrot.slane %v600, 1
        %v719 = vsel %vm704, %v716, %v718
        %v720 = vrot.slane %v601, 1
        %v721 = vsel %vm704, %v718, %v720
        %v730 = vsel %vm693, %v707, 0.0
        %v731 = vsel %vm694, %v709, 0.0
        %v732 = vsel %vm695, %v711, 0.0
        %v733 = vsel %vm696, %v713, 0.0
        %v734 = vsel %vm697, %v715, 0.0
        %v735 = vsel %vm698, %v717, 0.0
        %v736 = vsel %vm699, %v719, 0.0
        %v737 = vsel %vm700, %v721, 0.0
        %738 = vst [vmem:[#allocation2 + $0x28] sm:$0xff] %v730
        %739 = vst [vmem:[#allocation2 + $0x40] sm:$0xff] %v731
        %740 = vst [vmem:[#allocation2 + $0x58] sm:$0xff] %v732
        %741 = vst [vmem:[#allocation2 + $0x70] sm:$0xff] %v733
        %742 = vst [vmem:[#allocation2 + $0x88] sm:$0xff] %v734
        %743 = vst [vmem:[#allocation2 + $0xa0] sm:$0xff] %v735
        %744 = vst [vmem:[#allocation2 + $0xb8] sm:$0xff] %v736
        %745 = vst [vmem:[#allocation2 + $0xd0] sm:$0xff] %v737
        %v746 = vld [vmem:[#allocation2] sm:$0xff]
        %v747 = vld [vmem:[#allocation2 + $0x8] sm:$0xff]
        %v748 = vld [vmem:[#allocation2 + $0x10] sm:$0xff]
        %v749 = vld [vmem:[#allocation2 + $0x18] sm:$0xff]
        %v750 = vld [vmem:[#allocation2 + $0x20] sm:$0xff]
        %v751 = vld [vmem:[#allocation2 + $0x28] sm:$0xff]
        %v752 = vld [vmem:[#allocation2 + $0x30] sm:$0xff]
        %v753 = vld [vmem:[#allocation2 + $0x38] sm:$0xff]
        %v754 = vld [vmem:[#allocation2 + $0x40] sm:$0xff]
        %v755 = vld [vmem:[#allocation2 + $0x48] sm:$0xff]
        %v756 = vld [vmem:[#allocation2 + $0x50] sm:$0xff]
        %v757 = vld [vmem:[#allocation2 + $0x58] sm:$0xff]
        %v758 = vld [vmem:[#allocation2 + $0x60] sm:$0xff]
        %v759 = vld [vmem:[#allocation2 + $0x68] sm:$0xff]
        %v760 = vld [vmem:[#allocation2 + $0x70] sm:$0xff]
        %v761 = vld [vmem:[#allocation2 + $0x78] sm:$0xff]
        %v762 = vld [vmem:[#allocation2 + $0x80] sm:$0xff]
        %v763 = vld [vmem:[#allocation2 + $0x88] sm:$0xff]
        %v764 = vld [vmem:[#allocation2 + $0x90] sm:$0xff]
        %v765 = vld [vmem:[#allocation2 + $0x98] sm:$0xff]
        %v766 = vld [vmem:[#allocation2 + $0xa0] sm:$0xff]
        %v767 = vld [vmem:[#allocation2 + $0xa8] sm:$0xff]
        %v768 = vld [vmem:[#allocation2 + $0xb0] sm:$0xff]
        %v769 = vld [vmem:[#allocation2 + $0xb8] sm:$0xff]
        %v770 = vpack.c.bf16 %v749, %v746
        %v771 = vpack.c.bf16 %v750, %v747
        %v772 = vpack.c.bf16 %v751, %v748
        %v773 = vpack.c.bf16 %v755, %v752
        %v774 = vpack.c.bf16 %v756, %v753
        %v775 = vpack.c.bf16 %v757, %v754
        %v776 = vpack.c.bf16 %v761, %v758
        %v777 = vpack.c.bf16 %v762, %v759
        %v778 = vpack.c.bf16 %v763, %v760
        %v779 = vpack.c.bf16 %v767, %v764
        %v780 = vpack.c.bf16 %v768, %v765
        %v781 = vpack.c.bf16 %v769, %v766
        %v782 = vld [vmem:[#allocation3] sm:$0xf]
        %v783 = vld [vmem:[#allocation3 + $0x4] sm:$0xf]
        %v784 = vld [vmem:[#allocation3 + $0x8] sm:$0xf]
        %v785 = vld [vmem:[#allocation3 + $0xc] sm:$0xf]
        %v786 = vld [vmem:[#allocation3 + $0x10] sm:$0xf]
        %v787 = vld [vmem:[#allocation3 + $0x14] sm:$0xf]
        %v788 = vld [vmem:[#allocation3 + $0x18] sm:$0xf]
        %v789 = vld [vmem:[#allocation3 + $0x1c] sm:$0xf]
        %v790 = vld [vmem:[#allocation3 + $0x20] sm:$0xf]
        %v791 = vld [vmem:[#allocation3 + $0x24] sm:$0xf]
        %v792 = vld [vmem:[#allocation3 + $0x28] sm:$0xf]
        %v793 = vld [vmem:[#allocation3 + $0x2c] sm:$0xf]
        %v794 = vld [vmem:[#allocation3 + $0x30] sm:$0xf]
        %v795 = vld [vmem:[#allocation3 + $0x34] sm:$0xf]
        %v796 = vld [vmem:[#allocation3 + $0x38] sm:$0xf]
        %v797 = vld [vmem:[#allocation3 + $0x3c] sm:$0xf]
        %v798 = vld [vmem:[#allocation3 + $0x40] sm:$0xf]
        %v799 = vld [vmem:[#allocation3 + $0x44] sm:$0xf]
        %v800 = vld [vmem:[#allocation3 + $0x48] sm:$0xf]
        %v801 = vld [vmem:[#allocation3 + $0x4c] sm:$0xf]
        %v802 = vld [vmem:[#allocation3 + $0x50] sm:$0xf]
        %v803 = vld [vmem:[#allocation3 + $0x54] sm:$0xf]
        %v804 = vld [vmem:[#allocation3 + $0x58] sm:$0xf]
        %v805 = vld [vmem:[#allocation3 + $0x5c] sm:$0xf]
        %v806 = vld [vmem:[#allocation3 + $0x60] sm:$0xf]
        %v807 = vld [vmem:[#allocation3 + $0x64] sm:$0xf]
        %v808 = vld [vmem:[#allocation3 + $0x68] sm:$0xf]
        %v809 = vld [vmem:[#allocation3 + $0x6c] sm:$0xf]
        %v810 = vld [vmem:[#allocation3 + $0x70] sm:$0xf]
        %v811 = vld [vmem:[#allocation3 + $0x74] sm:$0xf]
        %v812 = vld [vmem:[#allocation3 + $0x78] sm:$0xf]
        %v813 = vld [vmem:[#allocation3 + $0x7c] sm:$0xf]
        %v814 = vld [vmem:[#allocation3 + $0x80] sm:$0xf]
        %v815 = vld [vmem:[#allocation3 + $0x84] sm:$0xf]
        %v816 = vld [vmem:[#allocation3 + $0x88] sm:$0xf]
        %v817 = vld [vmem:[#allocation3 + $0x8c] sm:$0xf]
        %v818 = vld [vmem:[#allocation3 + $0x90] sm:$0xf]
        %v819 = vld [vmem:[#allocation3 + $0x94] sm:$0xf]
        %v820 = vld [vmem:[#allocation3 + $0x98] sm:$0xf]
        %v821 = vld [vmem:[#allocation3 + $0x9c] sm:$0xf]
        %v822 = vld [vmem:[#allocation3 + $0xa0] sm:$0xf]
        %v823 = vld [vmem:[#allocation3 + $0xa4] sm:$0xf]
        %v824 = vld [vmem:[#allocation3 + $0xa8] sm:$0xf]
        %v825 = vld [vmem:[#allocation3 + $0xac] sm:$0xf]
        %v826 = vld [vmem:[#allocation3 + $0xb0] sm:$0xf]
        %v827 = vld [vmem:[#allocation3 + $0xb4] sm:$0xf]
        %v828 = vld [vmem:[#allocation3 + $0xb8] sm:$0xf]
        %v829 = vld [vmem:[#allocation3 + $0xbc] sm:$0xf]
        %v830 = vld [vmem:[#allocation2 + $0xc0] sm:$0xff]
        %v831 = vld [vmem:[#allocation2 + $0xc8] sm:$0xff]
        %v832 = vld [vmem:[#allocation2 + $0xd0] sm:$0xff]
        %v833 = vpack.c.bf16 %v752, %v749
        %v834 = vpack.c.bf16 %v753, %v750
        %v835 = vpack.c.bf16 %v754, %v751
        %v836 = vpack.c.bf16 %v758, %v755
        %v837 = vpack.c.bf16 %v759, %v756
        %v838 = vpack.c.bf16 %v760, %v757
        %v839 = vpack.c.bf16 %v764, %v761
        %v840 = vpack.c.bf16 %v765, %v762
        %v841 = vpack.c.bf16 %v766, %v763
        %v842 = vpack.c.bf16 %v830, %v767
        %v843 = vpack.c.bf16 %v831, %v768
        %v844 = vpack.c.bf16 %v832, %v769
        %s845 = scalar_lea.vmem [#allocation3], 192
        %v846 = vld [vmem:[%s845] sm:$0xf]
        %v847 = vld [vmem:[%s845 + $0x4] sm:$0xf]
        %v848 = vld [vmem:[%s845 + $0x8] sm:$0xf]
        %v849 = vld [vmem:[%s845 + $0xc] sm:$0xf]
        %v850 = vld [vmem:[%s845 + $0x10] sm:$0xf]
        %v851 = vld [vmem:[%s845 + $0x14] sm:$0xf]
        %v852 = vld [vmem:[%s845 + $0x18] sm:$0xf]
        %v853 = vld [vmem:[%s845 + $0x1c] sm:$0xf]
        %v854 = vld [vmem:[%s845 + $0x20] sm:$0xf]
        %v855 = vld [vmem:[%s845 + $0x24] sm:$0xf]
        %v856 = vld [vmem:[%s845 + $0x28] sm:$0xf]
        %v857 = vld [vmem:[%s845 + $0x2c] sm:$0xf]
        %v858 = vld [vmem:[%s845 + $0x30] sm:$0xf]
        %v859 = vld [vmem:[%s845 + $0x34] sm:$0xf]
        %v860 = vld [vmem:[%s845 + $0x38] sm:$0xf]
        %v861 = vld [vmem:[%s845 + $0x3c] sm:$0xf]
        %v862 = vld [vmem:[%s845 + $0x40] sm:$0xf]
        %v863 = vld [vmem:[%s845 + $0x44] sm:$0xf]
        %v864 = vld [vmem:[%s845 + $0x48] sm:$0xf]
        %v865 = vld [vmem:[%s845 + $0x4c] sm:$0xf]
        %v866 = vld [vmem:[%s845 + $0x50] sm:$0xf]
        %v867 = vld [vmem:[%s845 + $0x54] sm:$0xf]
        %v868 = vld [vmem:[%s845 + $0x58] sm:$0xf]
        %v869 = vld [vmem:[%s845 + $0x5c] sm:$0xf]
        %v870 = vld [vmem:[%s845 + $0x60] sm:$0xf]
        %v871 = vld [vmem:[%s845 + $0x64] sm:$0xf]
        %v872 = vld [vmem:[%s845 + $0x68] sm:$0xf]
        %v873 = vld [vmem:[%s845 + $0x6c] sm:$0xf]
        %v874 = vld [vmem:[%s845 + $0x70] sm:$0xf]
        %v875 = vld [vmem:[%s845 + $0x74] sm:$0xf]
        %v876 = vld [vmem:[%s845 + $0x78] sm:$0xf]
        %v877 = vld [vmem:[%s845 + $0x7c] sm:$0xf]
        %v878 = vld [vmem:[%s845 + $0x80] sm:$0xf]
        %v879 = vld [vmem:[%s845 + $0x84] sm:$0xf]
        %v880 = vld [vmem:[%s845 + $0x88] sm:$0xf]
        %v881 = vld [vmem:[%s845 + $0x8c] sm:$0xf]
        %v882 = vld [vmem:[%s845 + $0x90] sm:$0xf]
        %v883 = vld [vmem:[%s845 + $0x94] sm:$0xf]
        %v884 = vld [vmem:[%s845 + $0x98] sm:$0xf]
        %v885 = vld [vmem:[%s845 + $0x9c] sm:$0xf]
        %v886 = vld [vmem:[%s845 + $0xa0] sm:$0xf]
        %v887 = vld [vmem:[%s845 + $0xa4] sm:$0xf]
        %v888 = vld [vmem:[%s845 + $0xa8] sm:$0xf]
        %v889 = vld [vmem:[%s845 + $0xac] sm:$0xf]
        %v890 = vld [vmem:[%s845 + $0xb0] sm:$0xf]
        %v891 = vld [vmem:[%s845 + $0xb4] sm:$0xf]
        %v892 = vld [vmem:[%s845 + $0xb8] sm:$0xf]
        %v893 = vld [vmem:[%s845 + $0xbc] sm:$0xf]
        %v942 = vunpack.c.l.b16 %v846
        %v943 = vunpack.c.l.b16 %v847
        %v944 = vunpack.c.l.b16 %v848
        %v945 = vunpack.c.l.b16 %v849
        %v946 = vunpack.c.l.b16 %v850
        %v947 = vunpack.c.l.b16 %v851
        %v948 = vunpack.c.l.b16 %v852
        %v949 = vunpack.c.l.b16 %v853
        %v950 = vunpack.c.l.b16 %v854
        %v951 = vunpack.c.l.b16 %v855
        %v952 = vunpack.c.l.b16 %v856
        %v953 = vunpack.c.l.b16 %v857
        %v954 = vunpack.c.l.b16 %v858
        %v955 = vunpack.c.l.b16 %v859
        %v956 = vunpack.c.l.b16 %v860
        %v957 = vunpack.c.l.b16 %v861
        %v958 = vunpack.c.l.b16 %v862
        %v959 = vunpack.c.l.b16 %v863
        %v960 = vunpack.c.l.b16 %v864
        %v961 = vunpack.c.l.b16 %v865
        %v962 = vunpack.c.l.b16 %v866
        %v963 = vunpack.c.l.b16 %v867
        %v964 = vunpack.c.l.b16 %v868
        %v965 = vunpack.c.l.b16 %v869
        %v966 = vunpack.c.l.b16 %v870
        %v967 = vunpack.c.l.b16 %v871
        %v968 = vunpack.c.l.b16 %v872
        %v969 = vunpack.c.l.b16 %v873
        %v970 = vunpack.c.l.b16 %v874
        %v971 = vunpack.c.l.b16 %v875
        %v972 = vunpack.c.l.b16 %v876
        %v973 = vunpack.c.l.b16 %v877
        %v974 = vunpack.c.l.b16 %v878
        %v975 = vunpack.c.l.b16 %v879
        %v976 = vunpack.c.l.b16 %v880
        %v977 = vunpack.c.l.b16 %v881
        %v978 = vunpack.c.l.b16 %v882
        %v979 = vunpack.c.l.b16 %v883
        %v980 = vunpack.c.l.b16 %v884
        %v981 = vunpack.c.l.b16 %v885
        %v982 = vunpack.c.l.b16 %v886
        %v983 = vunpack.c.l.b16 %v887
        %v984 = vunpack.c.l.b16 %v888
        %v985 = vunpack.c.l.b16 %v889
        %v986 = vunpack.c.l.b16 %v890
        %v987 = vunpack.c.l.b16 %v891
        %v988 = vunpack.c.l.b16 %v892
        %v989 = vunpack.c.l.b16 %v893
        %v990 = vpack.c.b16 %v943, %v942
        %v991 = vpack.c.b16 %v945, %v944
        %v992 = vpack.c.b16 %v947, %v946
        %v993 = vpack.c.b16 %v949, %v948
        %v994 = vpack.c.b16 %v951, %v950
        %v995 = vpack.c.b16 %v953, %v952
        %v996 = vpack.c.b16 %v955, %v954
        %v997 = vpack.c.b16 %v957, %v956
        %v998 = vpack.c.b16 %v959, %v958
        %v999 = vpack.c.b16 %v961, %v960
        %v1000 = vpack.c.b16 %v963, %v962
        %v1001 = vpack.c.b16 %v965, %v964
        %v1002 = vpack.c.b16 %v967, %v966
        %v1003 = vpack.c.b16 %v969, %v968
        %v1004 = vpack.c.b16 %v971, %v970
        %v1005 = vpack.c.b16 %v973, %v972
        %v1006 = vpack.c.b16 %v975, %v974
        %v1007 = vpack.c.b16 %v977, %v976
        %v1008 = vpack.c.b16 %v979, %v978
        %v1009 = vpack.c.b16 %v981, %v980
        %v1010 = vpack.c.b16 %v983, %v982
        %v1011 = vpack.c.b16 %v985, %v984
        %v1012 = vpack.c.b16 %v987, %v986
        %v1013 = vpack.c.b16 %v989, %v988
        %1038 = vmatprep.subr.bf16.mxu0 0
        %1039 = vmatpush1.bf16.msra.mxu0 %v990
        %1040 = vmatprep.subr.bf16.mxu0 0
        %1041 = vmatpush1.bf16.msra.mxu0 %v991
        %1042 = vmatprep.subr.bf16.mxu0 0
        %1043 = vmatpush1.bf16.msra.mxu0 %v992
        %1044 = vmatprep.subr.bf16.mxu0 0
        %1045 = vmatpush1.bf16.msra.mxu0 %v993
        %1046 = vmatprep.subr.bf16.mxu0 0
        %1047 = vmatpush1.bf16.msra.mxu0 %v994
        %1048 = vmatprep.subr.bf16.mxu0 0
        %1049 = vmatpush1.bf16.msra.mxu0 %v995
        %1050 = vmatprep.subr.bf16.mxu0 0
        %1051 = vmatpush1.bf16.msra.mxu0 %v996
        %1052 = vmatprep.subr.bf16.mxu0 0
        %1053 = vmatpush1.bf16.msra.mxu0 %v997
        %1054 = vmatprep.subr.bf16.mxu0 0
        %1055 = vmatpush1.bf16.msra.mxu0 %v998
        %1056 = vmatprep.subr.bf16.mxu0 0
        %1057 = vmatpush1.bf16.msra.mxu0 %v999
        %1058 = vmatprep.subr.bf16.mxu0 0
        %1059 = vmatpush1.bf16.msra.mxu0 %v1000
        %1060 = vmatprep.subr.bf16.mxu0 0
        %1061 = vmatpush1.bf16.msra.mxu0 %v1001
        %1062 = vmatprep.subr.bf16.mxu0 0
        %1063 = vmatpush1.bf16.msra.mxu0 %v1002
        %1064 = vmatprep.subr.bf16.mxu0 0
        %1065 = vmatpush1.bf16.msra.mxu0 %v1003
        %1066 = vmatprep.subr.bf16.mxu0 0
        %1067 = vmatpush1.bf16.msra.mxu0 %v1004
        %1068 = vmatprep.subr.bf16.mxu0 0
        %1069 = vmatpush1.bf16.msra.mxu0 %v1005
        %1070 = vmatprep.mubr.bf16.mxu0 %v834
        %1071 = vmatmul.mubr.bf16.gmra.mrb[0].mxu0 %v833
        %v1072 = vpop.f32.mrb[0].mxu0
        %v1073 = vadd.f32 0.0, %v1072
        %v1074 = vpop.f32.mrb[0].mxu0
        %v1075 = vpop.f32.mrb[0].mxu0
        %v1076 = vadd.f32 0.0, %v1075
        %v1077 = vpop.f32.mrb[0].mxu0
        %1078 = vmatprep.mubr.bf16.mxu0 %v837
        %1079 = vmatmul.mubr.bf16.gmra.mrb[0].mxu0 %v836
        %v1080 = vpop.f32.mrb[0].mxu0
        %v1081 = vadd.f32 0.0, %v1080
        %v1082 = vpop.f32.mrb[0].mxu0
        %v1083 = vpop.f32.mrb[0].mxu0
        %v1084 = vadd.f32 0.0, %v1083
        %v1085 = vpop.f32.mrb[0].mxu0
        %1086 = vmatprep.mubr.bf16.mxu0 %v840
        %1087 = vmatmul.mubr.bf16.gmra.mrb[0].mxu0 %v839
        %v1088 = vpop.f32.mrb[0].mxu0
        %v1089 = vadd.f32 0.0, %v1088
        %v1090 = vpop.f32.mrb[0].mxu0
        %v1091 = vpop.f32.mrb[0].mxu0
        %v1092 = vadd.f32 0.0, %v1091
        %v1093 = vpop.f32.mrb[0].mxu0
        %1094 = vmatprep.mubr.bf16.mxu0 %v843
        %1095 = vmatmul.mubr.bf16.gmra.mrb[0].mxu0 %v842
        %v1096 = vpop.f32.mrb[0].mxu0
        %v1097 = vadd.f32 0.0, %v1096
        %v1098 = vpop.f32.mrb[0].mxu0
        %v1099 = vpop.f32.mrb[0].mxu0
        %v1100 = vadd.f32 0.0, %v1099
        %v1101 = vpop.f32.mrb[0].mxu0
        %1102 = vdwg.mxu0
        %1103 = vmatprep.subr.bf16.mxu0 0
        %1104 = vmatpush1.bf16.msra.mxu0 %v1006
        %1105 = vmatprep.subr.bf16.mxu0 0
        %1106 = vmatpush1.bf16.msra.mxu0 %v1007
        %1107 = vmatprep.subr.bf16.mxu0 0
        %1108 = vmatpush1.bf16.msra.mxu0 %v1008
        %1109 = vmatprep.subr.bf16.mxu0 0
        %1110 = vmatpush1.bf16.msra.mxu0 %v1009
        %1111 = vmatprep.subr.bf16.mxu0 0
        %1112 = vmatpush1.bf16.msra.mxu0 %v1010
        %1113 = vmatprep.subr.bf16.mxu0 0
        %1114 = vmatpush1.bf16.msra.mxu0 %v1011
        %1115 = vmatprep.subr.bf16.mxu0 0
        %1116 = vmatpush1.bf16.msra.mxu0 %v1012
        %1117 = vmatprep.subr.bf16.mxu0 0
        %1118 = vmatpush1.bf16.msra.mxu0 %v1013
        %1119 = vmatprep.subr.bf16.mxu0 0
        %1120 = vmatpush1.bf16.msra.mxu0 0
        %1121 = vmatprep.subr.bf16.mxu0 0
        %1122 = vmatpush1.bf16.msra.mxu0 0
        %1123 = vmatprep.subr.bf16.mxu0 0
        %1124 = vmatpush1.bf16.msra.mxu0 0
        %1125 = vmatprep.subr.bf16.mxu0 0
        %1126 = vmatpush1.bf16.msra.mxu0 0
        %1127 = vmatprep.subr.bf16.mxu0 0
        %1128 = vmatpush1.bf16.msra.mxu0 0
        %1129 = vmatprep.subr.bf16.mxu0 0
        %1130 = vmatpush1.bf16.msra.mxu0 0
        %1131 = vmatprep.subr.bf16.mxu0 0
        %1132 = vmatpush1.bf16.msra.mxu0 0
        %1133 = vmatprep.subr.bf16.mxu0 0
        %1134 = vmatpush1.bf16.msra.mxu0 0
        %1135 = vmatprep.mubr.bf16.mxu0 0
        %1136 = vmatmul.mubr.bf16.gmra.mrb[0].mxu0 %v835
        %v1137 = vpop.f32.mrb[0].mxu0
        %v1138 = vadd.f32 %v1073, %v1137
        %v1139 = vpop.f32.mrb[0].mxu0
        %v1140 = vpop.f32.mrb[0].mxu0
        %v1141 = vadd.f32 %v1076, %v1140
        %v1142 = vpop.f32.mrb[0].mxu0
        %1143 = vmatprep.mubr.bf16.mxu0 0
        %1144 = vmatmul.mubr.bf16.gmra.mrb[0].mxu0 %v838
        %v1145 = vpop.f32.mrb[0].mxu0
        %v1146 = vadd.f32 %v1081, %v1145
        %v1147 = vpop.f32.mrb[0].mxu0
        %v1148 = vpop.f32.mrb[0].mxu0
        %v1149 = vadd.f32 %v1084, %v1148
        %v1150 = vpop.f32.mrb[0].mxu0
        %1151 = vmatprep.mubr.bf16.mxu0 0
        %1152 = vmatmul.mubr.bf16.gmra.mrb[0].mxu0 %v841
        %v1153 = vpop.f32.mrb[0].mxu0
        %v1154 = vadd.f32 %v1089, %v1153
        %v1155 = vpop.f32.mrb[0].mxu0
        %v1156 = vpop.f32.mrb[0].mxu0
        %v1157 = vadd.f32 %v1092, %v1156
        %v1158 = vpop.f32.mrb[0].mxu0
        %1159 = vmatprep.mubr.bf16.mxu0 0
        %1160 = vmatmul.mubr.bf16.gmra.mrb[0].mxu0 %v844
        %v1161 = vpop.f32.mrb[0].mxu0
        %v1162 = vadd.f32 %v1097, %v1161
        %v1163 = vpop.f32.mrb[0].mxu0
        %v1164 = vpop.f32.mrb[0].mxu0
        %v1165 = vadd.f32 %v1100, %v1164
        %v1166 = vpop.f32.mrb[0].mxu0
        %1167 = vdwg.mxu0
        %v1216 = vunpack.c.l.b16 %v782
        %v1217 = vunpack.c.l.b16 %v783
        %v1218 = vunpack.c.l.b16 %v784
        %v1219 = vunpack.c.l.b16 %v785
        %v1220 = vunpack.c.l.b16 %v786
        %v1221 = vunpack.c.l.b16 %v787
        %v1222 = vunpack.c.l.b16 %v788
        %v1223 = vunpack.c.l.b16 %v789
        %v1224 = vunpack.c.l.b16 %v790
        %v1225 = vunpack.c.l.b16 %v791
        %v1226 = vunpack.c.l.b16 %v792
        %v1227 = vunpack.c.l.b16 %v793
        %v1228 = vunpack.c.l.b16 %v794
        %v1229 = vunpack.c.l.b16 %v795
        %v1230 = vunpack.c.l.b16 %v796
        %v1231 = vunpack.c.l.b16 %v797
        %v1232 = vunpack.c.l.b16 %v798
        %v1233 = vunpack.c.l.b16 %v799
        %v1234 = vunpack.c.l.b16 %v800
        %v1235 = vunpack.c.l.b16 %v801
        %v1236 = vunpack.c.l.b16 %v802
        %v1237 = vunpack.c.l.b16 %v803
        %v1238 = vunpack.c.l.b16 %v804
        %v1239 = vunpack.c.l.b16 %v805
        %v1240 = vunpack.c.l.b16 %v806
        %v1241 = vunpack.c.l.b16 %v807
        %v1242 = vunpack.c.l.b16 %v808
        %v1243 = vunpack.c.l.b16 %v809
        %v1244 = vunpack.c.l.b16 %v810
        %v1245 = vunpack.c.l.b16 %v811
        %v1246 = vunpack.c.l.b16 %v812
        %v1247 = vunpack.c.l.b16 %v813
        %v1248 = vunpack.c.l.b16 %v814
        %v1249 = vunpack.c.l.b16 %v815
        %v1250 = vunpack.c.l.b16 %v816
        %v1251 = vunpack.c.l.b16 %v817
        %v1252 = vunpack.c.l.b16 %v818
        %v1253 = vunpack.c.l.b16 %v819
        %v1254 = vunpack.c.l.b16 %v820
        %v1255 = vunpack.c.l.b16 %v821
        %v1256 = vunpack.c.l.b16 %v822
        %v1257 = vunpack.c.l.b16 %v823
        %v1258 = vunpack.c.l.b16 %v824
        %v1259 = vunpack.c.l.b16 %v825
        %v1260 = vunpack.c.l.b16 %v826
        %v1261 = vunpack.c.l.b16 %v827
        %v1262 = vunpack.c.l.b16 %v828
        %v1263 = vunpack.c.l.b16 %v829
        %v1264 = vpack.c.b16 %v1217, %v1216
        %v1265 = vpack.c.b16 %v1219, %v1218
        %v1266 = vpack.c.b16 %v1221, %v1220
        %v1267 = vpack.c.b16 %v1223, %v1222
        %v1268 = vpack.c.b16 %v1225, %v1224
        %v1269 = vpack.c.b16 %v1227, %v1226
        %v1270 = vpack.c.b16 %v1229, %v1228
        %v1271 = vpack.c.b16 %v1231, %v1230
        %v1272 = vpack.c.b16 %v1233, %v1232
        %v1273 = vpack.c.b16 %v1235, %v1234
        %v1274 = vpack.c.b16 %v1237, %v1236
        %v1275 = vpack.c.b16 %v1239, %v1238
        %v1276 = vpack.c.b16 %v1241, %v1240
        %v1277 = vpack.c.b16 %v1243, %v1242
        %v1278 = vpack.c.b16 %v1245, %v1244
        %v1279 = vpack.c.b16 %v1247, %v1246
        %v1280 = vpack.c.b16 %v1249, %v1248
        %v1281 = vpack.c.b16 %v1251, %v1250
        %v1282 = vpack.c.b16 %v1253, %v1252
        %v1283 = vpack.c.b16 %v1255, %v1254
        %v1284 = vpack.c.b16 %v1257, %v1256
        %v1285 = vpack.c.b16 %v1259, %v1258
        %v1286 = vpack.c.b16 %v1261, %v1260
        %v1287 = vpack.c.b16 %v1263, %v1262
        %1312 = vmatprep.subr.bf16.mxu0 0
        %1313 = vmatpush1.bf16.msra.mxu0 %v1264
        %1314 = vmatprep.subr.bf16.mxu0 0
        %1315 = vmatpush1.bf16.msra.mxu0 %v1265
        %1316 = vmatprep.subr.bf16.mxu0 0
        %1317 = vmatpush1.bf16.msra.mxu0 %v1266
        %1318 = vmatprep.subr.bf16.mxu0 0
        %1319 = vmatpush1.bf16.msra.mxu0 %v1267
        %1320 = vmatprep.subr.bf16.mxu0 0
        %1321 = vmatpush1.bf16.msra.mxu0 %v1268
        %1322 = vmatprep.subr.bf16.mxu0 0
        %1323 = vmatpush1.bf16.msra.mxu0 %v1269
        %1324 = vmatprep.subr.bf16.mxu0 0
        %1325 = vmatpush1.bf16.msra.mxu0 %v1270
        %1326 = vmatprep.subr.bf16.mxu0 0
        %1327 = vmatpush1.bf16.msra.mxu0 %v1271
        %1328 = vmatprep.subr.bf16.mxu0 0
        %1329 = vmatpush1.bf16.msra.mxu0 %v1272
        %1330 = vmatprep.subr.bf16.mxu0 0
        %1331 = vmatpush1.bf16.msra.mxu0 %v1273
        %1332 = vmatprep.subr.bf16.mxu0 0
        %1333 = vmatpush1.bf16.msra.mxu0 %v1274
        %1334 = vmatprep.subr.bf16.mxu0 0
        %1335 = vmatpush1.bf16.msra.mxu0 %v1275
        %1336 = vmatprep.subr.bf16.mxu0 0
        %1337 = vmatpush1.bf16.msra.mxu0 %v1276
        %1338 = vmatprep.subr.bf16.mxu0 0
        %1339 = vmatpush1.bf16.msra.mxu0 %v1277
        %1340 = vmatprep.subr.bf16.mxu0 0
        %1341 = vmatpush1.bf16.msra.mxu0 %v1278
        %1342 = vmatprep.subr.bf16.mxu0 0
        %1343 = vmatpush1.bf16.msra.mxu0 %v1279
        %1344 = vmatprep.mubr.bf16.mxu0 %v771
        %1345 = vmatmul.mubr.bf16.gmra.mrb[0].mxu0 %v770
        %v1346 = vpop.f32.mrb[0].mxu0
        %v1347 = vadd.f32 %v1138, %v1346
        %v1348 = vpop.f32.mrb[0].mxu0
        %v1349 = vpop.f32.mrb[0].mxu0
        %v1350 = vadd.f32 %v1141, %v1349
        %v1351 = vpop.f32.mrb[0].mxu0
        %1352 = vmatprep.mubr.bf16.mxu0 %v774
        %1353 = vmatmul.mubr.bf16.gmra.mrb[0].mxu0 %v773
        %v1354 = vpop.f32.mrb[0].mxu0
        %v1355 = vadd.f32 %v1146, %v1354
        %v1356 = vpop.f32.mrb[0].mxu0
        %v1357 = vpop.f32.mrb[0].mxu0
        %v1358 = vadd.f32 %v1149, %v1357
        %v1359 = vpop.f32.mrb[0].mxu0
        %1360 = vmatprep.mubr.bf16.mxu0 %v777
        %1361 = vmatmul.mubr.bf16.gmra.mrb[0].mxu0 %v776
        %v1362 = vpop.f32.mrb[0].mxu0
        %v1363 = vadd.f32 %v1154, %v1362
        %v1364 = vpop.f32.mrb[0].mxu0
        %v1365 = vpop.f32.mrb[0].mxu0
        %v1366 = vadd.f32 %v1157, %v1365
        %v1367 = vpop.f32.mrb[0].mxu0
        %1368 = vmatprep.mubr.bf16.mxu0 %v780
        %1369 = vmatmul.mubr.bf16.gmra.mrb[0].mxu0 %v779
        %v1370 = vpop.f32.mrb[0].mxu0
        %v1371 = vadd.f32 %v1162, %v1370
        %v1372 = vpop.f32.mrb[0].mxu0
        %v1373 = vpop.f32.mrb[0].mxu0
        %v1374 = vadd.f32 %v1165, %v1373
        %v1375 = vpop.f32.mrb[0].mxu0
        %1376 = vdwg.mxu0
        %1377 = vmatprep.subr.bf16.mxu0 0
        %1378 = vmatpush1.bf16.msra.mxu0 %v1280
        %1379 = vmatprep.subr.bf16.mxu0 0
        %1380 = vmatpush1.bf16.msra.mxu0 %v1281
        %1381 = vmatprep.subr.bf16.mxu0 0
        %1382 = vmatpush1.bf16.msra.mxu0 %v1282
        %1383 = vmatprep.subr.bf16.mxu0 0
        %1384 = vmatpush1.bf16.msra.mxu0 %v1283
        %1385 = vmatprep.subr.bf16.mxu0 0
        %1386 = vmatpush1.bf16.msra.mxu0 %v1284
        %1387 = vmatprep.subr.bf16.mxu0 0
        %1388 = vmatpush1.bf16.msra.mxu0 %v1285
        %1389 = vmatprep.subr.bf16.mxu0 0
        %1390 = vmatpush1.bf16.msra.mxu0 %v1286
        %1391 = vmatprep.subr.bf16.mxu0 0
        %1392 = vmatpush1.bf16.msra.mxu0 %v1287
        %1393 = vmatprep.subr.bf16.mxu0 0
        %1394 = vmatpush1.bf16.msra.mxu0 0
        %1395 = vmatprep.subr.bf16.mxu0 0
        %1396 = vmatpush1.bf16.msra.mxu0 0
        %1397 = vmatprep.subr.bf16.mxu0 0
        %1398 = vmatpush1.bf16.msra.mxu0 0
        %1399 = vmatprep.subr.bf16.mxu0 0
        %1400 = vmatpush1.bf16.msra.mxu0 0
        %1401 = vmatprep.subr.bf16.mxu0 0
        %1402 = vmatpush1.bf16.msra.mxu0 0
        %1403 = vmatprep.subr.bf16.mxu0 0
        %1404 = vmatpush1.bf16.msra.mxu0 0
        %1405 = vmatprep.subr.bf16.mxu0 0
        %1406 = vmatpush1.bf16.msra.mxu0 0
        %1407 = vmatprep.subr.bf16.mxu0 0
        %1408 = vmatpush1.bf16.msra.mxu0 0
        %1409 = vmatprep.mubr.bf16.mxu0 0
        %1410 = vmatmul.mubr.bf16.gmra.mrb[0].mxu0 %v772
        %v1411 = vpop.f32.mrb[0].mxu0
        %v1412 = vadd.f32 %v1347, %v1411
        %v1413 = vpop.f32.mrb[0].mxu0
        %v1414 = vpop.f32.mrb[0].mxu0
        %v1415 = vadd.f32 %v1350, %v1414
        %v1416 = vpop.f32.mrb[0].mxu0
        %1417 = vmatprep.mubr.bf16.mxu0 0
        %1418 = vmatmul.mubr.bf16.gmra.mrb[0].mxu0 %v775
        %v1419 = vpop.f32.mrb[0].mxu0
        %v1420 = vadd.f32 %v1355, %v1419
        %v1421 = vpop.f32.mrb[0].mxu0
        %v1422 = vpop.f32.mrb[0].mxu0
        %v1423 = vadd.f32 %v1358, %v1422
        %v1424 = vpop.f32.mrb[0].mxu0
        %1425 = vmatprep.mubr.bf16.mxu0 0
        %1426 = vmatmul.mubr.bf16.gmra.mrb[0].mxu0 %v778
        %v1427 = vpop.f32.mrb[0].mxu0
        %v1428 = vadd.f32 %v1363, %v1427
        %v1429 = vpop.f32.mrb[0].mxu0
        %v1430 = vpop.f32.mrb[0].mxu0
        %v1431 = vadd.f32 %v1366, %v1430
        %v1432 = vpop.f32.mrb[0].mxu0
        %1433 = vmatprep.mubr.bf16.mxu0 0
        %1434 = vmatmul.mubr.bf16.gmra.mrb[0].mxu0 %v781
        %v1435 = vpop.f32.mrb[0].mxu0
        %v1436 = vadd.f32 %v1371, %v1435
        %v1437 = vpop.f32.mrb[0].mxu0
        %v1438 = vpop.f32.mrb[0].mxu0
        %v1439 = vadd.f32 %v1374, %v1438
        %v1440 = vpop.f32.mrb[0].mxu0
        %1441 = vdwg.mxu0
        %v1442 = vld [vmem:[#allocation2 + $0x30] sm:$0xff]
        %v1443 = vld [vmem:[#allocation2 + $0x38] sm:$0xff]
        %v1444 = vld [vmem:[#allocation2 + $0x40] sm:$0xff]
        %v1445 = vld [vmem:[#allocation2 + $0x48] sm:$0xff]
        %v1446 = vld [vmem:[#allocation2 + $0x50] sm:$0xff]
        %v1447 = vld [vmem:[#allocation2 + $0x58] sm:$0xff]
        %v1448 = vld [vmem:[#allocation2 + $0x60] sm:$0xff]
        %v1449 = vld [vmem:[#allocation2 + $0x68] sm:$0xff]
        %v1450 = vld [vmem:[#allocation2 + $0x70] sm:$0xff]
        %v1451 = vld [vmem:[#allocation2 + $0x78] sm:$0xff]
        %v1452 = vld [vmem:[#allocation2 + $0x80] sm:$0xff]
        %v1453 = vld [vmem:[#allocation2 + $0x88] sm:$0xff]
        %v1454 = vld [vmem:[#allocation2 + $0x90] sm:$0xff]
        %v1455 = vld [vmem:[#allocation2 + $0x98] sm:$0xff]
        %v1456 = vld [vmem:[#allocation2 + $0xa0] sm:$0xff]
        %v1457 = vld [vmem:[#allocation2 + $0xa8] sm:$0xff]
        %v1458 = vld [vmem:[#allocation2 + $0xb0] sm:$0xff]
        %v1459 = vld [vmem:[#allocation2 + $0xb8] sm:$0xff]
        %v1460 = vld [vmem:[#allocation2 + $0xc0] sm:$0xff]
        %v1461 = vld [vmem:[#allocation2 + $0xc8] sm:$0xff]
        %v1462 = vld [vmem:[#allocation2 + $0xd0] sm:$0xff]
        %v1463 = vld [vmem:[#allocation2 + $0xd8] sm:$0xff]
        %v1464 = vld [vmem:[#allocation2 + $0xe0] sm:$0xff]
        %v1465 = vld [vmem:[#allocation2 + $0xe8] sm:$0xff]
        %v1466 = vpack.c.bf16 %v1445, %v1442
        %v1467 = vpack.c.bf16 %v1446, %v1443
        %v1468 = vpack.c.bf16 %v1447, %v1444
        %v1469 = vpack.c.bf16 %v1451, %v1448
        %v1470 = vpack.c.bf16 %v1452, %v1449
        %v1471 = vpack.c.bf16 %v1453, %v1450
        %v1472 = vpack.c.bf16 %v1457, %v1454
        %v1473 = vpack.c.bf16 %v1458, %v1455
        %v1474 = vpack.c.bf16 %v1459, %v1456
        %v1475 = vpack.c.bf16 %v1463, %v1460
        %v1476 = vpack.c.bf16 %v1464, %v1461
        %v1477 = vpack.c.bf16 %v1465, %v1462
        %s1478 = scalar_lea.vmem [#allocation3], 384
        %v1479 = vld [vmem:[%s1478] sm:$0xf]
        %v1480 = vld [vmem:[%s1478 + $0x4] sm:$0xf]
        %v1481 = vld [vmem:[%s1478 + $0x8] sm:$0xf]
        %v1482 = vld [vmem:[%s1478 + $0xc] sm:$0xf]
        %v1483 = vld [vmem:[%s1478 + $0x10] sm:$0xf]
        %v1484 = vld [vmem:[%s1478 + $0x14] sm:$0xf]
        %v1485 = vld [vmem:[%s1478 + $0x18] sm:$0xf]
        %v1486 = vld [vmem:[%s1478 + $0x1c] sm:$0xf]
        %v1487 = vld [vmem:[%s1478 + $0x20] sm:$0xf]
        %v1488 = vld [vmem:[%s1478 + $0x24] sm:$0xf]
        %v1489 = vld [vmem:[%s1478 + $0x28] sm:$0xf]
        %v1490 = vld [vmem:[%s1478 + $0x2c] sm:$0xf]
        %v1491 = vld [vmem:[%s1478 + $0x30] sm:$0xf]
        %v1492 = vld [vmem:[%s1478 + $0x34] sm:$0xf]
        %v1493 = vld [vmem:[%s1478 + $0x38] sm:$0xf]
        %v1494 = vld [vmem:[%s1478 + $0x3c] sm:$0xf]
        %v1495 = vld [vmem:[%s1478 + $0x40] sm:$0xf]
        %v1496 = vld [vmem:[%s1478 + $0x44] sm:$0xf]
        %v1497 = vld [vmem:[%s1478 + $0x48] sm:$0xf]
        %v1498 = vld [vmem:[%s1478 + $0x4c] sm:$0xf]
        %v1499 = vld [vmem:[%s1478 + $0x50] sm:$0xf]
        %v1500 = vld [vmem:[%s1478 + $0x54] sm:$0xf]
        %v1501 = vld [vmem:[%s1478 + $0x58] sm:$0xf]
        %v1502 = vld [vmem:[%s1478 + $0x5c] sm:$0xf]
        %v1503 = vld [vmem:[%s1478 + $0x60] sm:$0xf]
        %v1504 = vld [vmem:[%s1478 + $0x64] sm:$0xf]
        %v1505 = vld [vmem:[%s1478 + $0x68] sm:$0xf]
        %v1506 = vld [vmem:[%s1478 + $0x6c] sm:$0xf]
        %v1507 = vld [vmem:[%s1478 + $0x70] sm:$0xf]
        %v1508 = vld [vmem:[%s1478 + $0x74] sm:$0xf]
        %v1509 = vld [vmem:[%s1478 + $0x78] sm:$0xf]
        %v1510 = vld [vmem:[%s1478 + $0x7c] sm:$0xf]
        %v1511 = vld [vmem:[%s1478 + $0x80] sm:$0xf]
        %v1512 = vld [vmem:[%s1478 + $0x84] sm:$0xf]
        %v1513 = vld [vmem:[%s1478 + $0x88] sm:$0xf]
        %v1514 = vld [vmem:[%s1478 + $0x8c] sm:$0xf]
        %v1515 = vld [vmem:[%s1478 + $0x90] sm:$0xf]
        %v1516 = vld [vmem:[%s1478 + $0x94] sm:$0xf]
        %v1517 = vld [vmem:[%s1478 + $0x98] sm:$0xf]
        %v1518 = vld [vmem:[%s1478 + $0x9c] sm:$0xf]
        %v1519 = vld [vmem:[%s1478 + $0xa0] sm:$0xf]
        %v1520 = vld [vmem:[%s1478 + $0xa4] sm:$0xf]
        %v1521 = vld [vmem:[%s1478 + $0xa8] sm:$0xf]
        %v1522 = vld [vmem:[%s1478 + $0xac] sm:$0xf]
        %v1523 = vld [vmem:[%s1478 + $0xb0] sm:$0xf]
        %v1524 = vld [vmem:[%s1478 + $0xb4] sm:$0xf]
        %v1525 = vld [vmem:[%s1478 + $0xb8] sm:$0xf]
        %v1526 = vld [vmem:[%s1478 + $0xbc] sm:$0xf]
        %v1575 = vunpack.c.l.b16 %v1479
        %v1576 = vunpack.c.l.b16 %v1480
        %v1577 = vunpack.c.l.b16 %v1481
        %v1578 = vunpack.c.l.b16 %v1482
        %v1579 = vunpack.c.l.b16 %v1483
        %v1580 = vunpack.c.l.b16 %v1484
        %v1581 = vunpack.c.l.b16 %v1485
        %v1582 = vunpack.c.l.b16 %v1486
        %v1583 = vunpack.c.l.b16 %v1487
        %v1584 = vunpack.c.l.b16 %v1488
        %v1585 = vunpack.c.l.b16 %v1489
        %v1586 = vunpack.c.l.b16 %v1490
        %v1587 = vunpack.c.l.b16 %v1491
        %v1588 = vunpack.c.l.b16 %v1492
        %v1589 = vunpack.c.l.b16 %v1493
        %v1590 = vunpack.c.l.b16 %v1494
        %v1591 = vunpack.c.l.b16 %v1495
        %v1592 = vunpack.c.l.b16 %v1496
        %v1593 = vunpack.c.l.b16 %v1497
        %v1594 = vunpack.c.l.b16 %v1498
        %v1595 = vunpack.c.l.b16 %v1499
        %v1596 = vunpack.c.l.b16 %v1500
        %v1597 = vunpack.c.l.b16 %v1501
        %v1598 = vunpack.c.l.b16 %v1502
        %v1599 = vunpack.c.l.b16 %v1503
        %v1600 = vunpack.c.l.b16 %v1504
        %v1601 = vunpack.c.l.b16 %v1505
        %v1602 = vunpack.c.l.b16 %v1506
        %v1603 = vunpack.c.l.b16 %v1507
        %v1604 = vunpack.c.l.b16 %v1508
        %v1605 = vunpack.c.l.b16 %v1509
        %v1606 = vunpack.c.l.b16 %v1510
        %v1607 = vunpack.c.l.b16 %v1511
        %v1608 = vunpack.c.l.b16 %v1512
        %v1609 = vunpack.c.l.b16 %v1513
        %v1610 = vunpack.c.l.b16 %v1514
        %v1611 = vunpack.c.l.b16 %v1515
        %v1612 = vunpack.c.l.b16 %v1516
        %v1613 = vunpack.c.l.b16 %v1517
        %v1614 = vunpack.c.l.b16 %v1518
        %v1615 = vunpack.c.l.b16 %v1519
        %v1616 = vunpack.c.l.b16 %v1520
        %v1617 = vunpack.c.l.b16 %v1521
        %v1618 = vunpack.c.l.b16 %v1522
        %v1619 = vunpack.c.l.b16 %v1523
        %v1620 = vunpack.c.l.b16 %v1524
        %v1621 = vunpack.c.l.b16 %v1525
        %v1622 = vunpack.c.l.b16 %v1526
        %v1623 = vpack.c.b16 %v1576, %v1575
        %v1624 = vpack.c.b16 %v1578, %v1577
        %v1625 = vpack.c.b16 %v1580, %v1579
        %v1626 = vpack.c.b16 %v1582, %v1581
        %v1627 = vpack.c.b16 %v1584, %v1583
        %v1628 = vpack.c.b16 %v1586, %v1585
        %v1629 = vpack.c.b16 %v1588, %v1587
        %v1630 = vpack.c.b16 %v1590, %v1589
        %v1631 = vpack.c.b16 %v1592, %v1591
        %v1632 = vpack.c.b16 %v1594, %v1593
        %v1633 = vpack.c.b16 %v1596, %v1595
        %v1634 = vpack.c.b16 %v1598, %v1597
        %v1635 = vpack.c.b16 %v1600, %v1599
        %v1636 = vpack.c.b16 %v1602, %v1601
        %v1637 = vpack.c.b16 %v1604, %v1603
        %v1638 = vpack.c.b16 %v1606, %v1605
        %v1639 = vpack.c.b16 %v1608, %v1607
        %v1640 = vpack.c.b16 %v1610, %v1609
        %v1641 = vpack.c.b16 %v1612, %v1611
        %v1642 = vpack.c.b16 %v1614, %v1613
        %v1643 = vpack.c.b16 %v1616, %v1615
        %v1644 = vpack.c.b16 %v1618, %v1617
        %v1645 = vpack.c.b16 %v1620, %v1619
        %v1646 = vpack.c.b16 %v1622, %v1621
        %1671 = vmatprep.subr.bf16.mxu0 0
        %1672 = vmatpush1.bf16.msra.mxu0 %v1623
        %1673 = vmatprep.subr.bf16.mxu0 0
        %1674 = vmatpush1.bf16.msra.mxu0 %v1624
        %1675 = vmatprep.subr.bf16.mxu0 0
        %1676 = vmatpush1.bf16.msra.mxu0 %v1625
        %1677 = vmatprep.subr.bf16.mxu0 0
        %1678 = vmatpush1.bf16.msra.mxu0 %v1626
        %1679 = vmatprep.subr.bf16.mxu0 0
        %1680 = vmatpush1.bf16.msra.mxu0 %v1627
        %1681 = vmatprep.subr.bf16.mxu0 0
        %1682 = vmatpush1.bf16.msra.mxu0 %v1628
        %1683 = vmatprep.subr.bf16.mxu0 0
        %1684 = vmatpush1.bf16.msra.mxu0 %v1629
        %1685 = vmatprep.subr.bf16.mxu0 0
        %1686 = vmatpush1.bf16.msra.mxu0 %v1630
        %1687 = vmatprep.subr.bf16.mxu0 0
        %1688 = vmatpush1.bf16.msra.mxu0 %v1631
        %1689 = vmatprep.subr.bf16.mxu0 0
        %1690 = vmatpush1.bf16.msra.mxu0 %v1632
        %1691 = vmatprep.subr.bf16.mxu0 0
        %1692 = vmatpush1.bf16.msra.mxu0 %v1633
        %1693 = vmatprep.subr.bf16.mxu0 0
        %1694 = vmatpush1.bf16.msra.mxu0 %v1634
        %1695 = vmatprep.subr.bf16.mxu0 0
        %1696 = vmatpush1.bf16.msra.mxu0 %v1635
        %1697 = vmatprep.subr.bf16.mxu0 0
        %1698 = vmatpush1.bf16.msra.mxu0 %v1636
        %1699 = vmatprep.subr.bf16.mxu0 0
        %1700 = vmatpush1.bf16.msra.mxu0 %v1637
        %1701 = vmatprep.subr.bf16.mxu0 0
        %1702 = vmatpush1.bf16.msra.mxu0 %v1638
        %1703 = vmatprep.mubr.bf16.mxu0 %v1467
        %1704 = vmatmul.mubr.bf16.gmra.mrb[0].mxu0 %v1466
        %v1705 = vpop.f32.mrb[0].mxu0
        %v1706 = vadd.f32 0.0, %v1705
        %v1707 = vpop.f32.mrb[0].mxu0
        %v1708 = vpop.f32.mrb[0].mxu0
        %v1709 = vadd.f32 0.0, %v1708
        %v1710 = vpop.f32.mrb[0].mxu0
        %1711 = vmatprep.mubr.bf16.mxu0 %v1470
        %1712 = vmatmul.mubr.bf16.gmra.mrb[0].mxu0 %v1469
        %v1713 = vpop.f32.mrb[0].mxu0
        %v1714 = vadd.f32 0.0, %v1713
        %v1715 = vpop.f32.mrb[0].mxu0
        %v1716 = vpop.f32.mrb[0].mxu0
        %v1717 = vadd.f32 0.0, %v1716
        %v1718 = vpop.f32.mrb[0].mxu0
        %1719 = vmatprep.mubr.bf16.mxu0 %v1473
        %1720 = vmatmul.mubr.bf16.gmra.mrb[0].mxu0 %v1472
        %v1721 = vpop.f32.mrb[0].mxu0
        %v1722 = vadd.f32 0.0, %v1721
        %v1723 = vpop.f32.mrb[0].mxu0
        %v1724 = vpop.f32.mrb[0].mxu0
        %v1725 = vadd.f32 0.0, %v1724
        %v1726 = vpop.f32.mrb[0].mxu0
        %1727 = vmatprep.mubr.bf16.mxu0 %v1476
        %1728 = vmatmul.mubr.bf16.gmra.mrb[0].mxu0 %v1475
        %v1729 = vpop.f32.mrb[0].mxu0
        %v1730 = vadd.f32 0.0, %v1729
        %v1731 = vpop.f32.mrb[0].mxu0
        %v1732 = vpop.f32.mrb[0].mxu0
        %v1733 = vadd.f32 0.0, %v1732
        %v1734 = vpop.f32.mrb[0].mxu0
        %1735 = vdwg.mxu0
        %1736 = vmatprep.subr.bf16.mxu0 0
        %1737 = vmatpush1.bf16.msra.mxu0 %v1639
        %1738 = vmatprep.subr.bf16.mxu0 0
        %1739 = vmatpush1.bf16.msra.mxu0 %v1640
        %1740 = vmatprep.subr.bf16.mxu0 0
        %1741 = vmatpush1.bf16.msra.mxu0 %v1641
        %1742 = vmatprep.subr.bf16.mxu0 0
        %1743 = vmatpush1.bf16.msra.mxu0 %v1642
        %1744 = vmatprep.subr.bf16.mxu0 0
        %1745 = vmatpush1.bf16.msra.mxu0 %v1643
        %1746 = vmatprep.subr.bf16.mxu0 0
        %1747 = vmatpush1.bf16.msra.mxu0 %v1644
        %1748 = vmatprep.subr.bf16.mxu0 0
        %1749 = vmatpush1.bf16.msra.mxu0 %v1645
        %1750 = vmatprep.subr.bf16.mxu0 0
        %1751 = vmatpush1.bf16.msra.mxu0 %v1646
        %1752 = vmatprep.subr.bf16.mxu0 0
        %1753 = vmatpush1.bf16.msra.mxu0 0
        %1754 = vmatprep.subr.bf16.mxu0 0
        %1755 = vmatpush1.bf16.msra.mxu0 0
        %1756 = vmatprep.subr.bf16.mxu0 0
        %1757 = vmatpush1.bf16.msra.mxu0 0
        %1758 = vmatprep.subr.bf16.mxu0 0
        %1759 = vmatpush1.bf16.msra.mxu0 0
        %1760 = vmatprep.subr.bf16.mxu0 0
        %1761 = vmatpush1.bf16.msra.mxu0 0
        %1762 = vmatprep.subr.bf16.mxu0 0
        %1763 = vmatpush1.bf16.msra.mxu0 0
        %1764 = vmatprep.subr.bf16.mxu0 0
        %1765 = vmatpush1.bf16.msra.mxu0 0
        %1766 = vmatprep.subr.bf16.mxu0 0
        %1767 = vmatpush1.bf16.msra.mxu0 0
        %1768 = vmatprep.mubr.bf16.mxu0 0
        %1769 = vmatmul.mubr.bf16.gmra.mrb[0].mxu0 %v1468
        %v1770 = vpop.f32.mrb[0].mxu0
        %v1771 = vadd.f32 %v1706, %v1770
        %v1772 = vpop.f32.mrb[0].mxu0
        %v1773 = vpop.f32.mrb[0].mxu0
        %v1774 = vadd.f32 %v1709, %v1773
        %v1775 = vpop.f32.mrb[0].mxu0
        %1776 = vmatprep.mubr.bf16.mxu0 0
        %1777 = vmatmul.mubr.bf16.gmra.mrb[0].mxu0 %v1471
        %v1778 = vpop.f32.mrb[0].mxu0
        %v1779 = vadd.f32 %v1714, %v1778
        %v1780 = vpop.f32.mrb[0].mxu0
        %v1781 = vpop.f32.mrb[0].mxu0
        %v1782 = vadd.f32 %v1717, %v1781
        %v1783 = vpop.f32.mrb[0].mxu0
        %1784 = vmatprep.mubr.bf16.mxu0 0
        %1785 = vmatmul.mubr.bf16.gmra.mrb[0].mxu0 %v1474
        %v1786 = vpop.f32.mrb[0].mxu0
        %v1787 = vadd.f32 %v1722, %v1786
        %v1788 = vpop.f32.mrb[0].mxu0
        %v1789 = vpop.f32.mrb[0].mxu0
        %v1790 = vadd.f32 %v1725, %v1789
        %v1791 = vpop.f32.mrb[0].mxu0
        %1792 = vmatprep.mubr.bf16.mxu0 0
        %1793 = vmatmul.mubr.bf16.gmra.mrb[0].mxu0 %v1477
        %v1794 = vpop.f32.mrb[0].mxu0
        %v1795 = vadd.f32 %v1730, %v1794
        %v1796 = vpop.f32.mrb[0].mxu0
        %v1797 = vpop.f32.mrb[0].mxu0
        %v1798 = vadd.f32 %v1733, %v1797
        %v1799 = vpop.f32.mrb[0].mxu0
        %1800 = vdwg.mxu0
        %v1801 = vadd.f32 %v1412, %v1771
        %v1802 = vadd.f32 %v1415, %v1774
        %v1803 = vadd.f32 %v1420, %v1779
        %v1804 = vadd.f32 %v1423, %v1782
        %v1805 = vadd.f32 %v1428, %v1787
        %v1806 = vadd.f32 %v1431, %v1790
        %v1807 = vadd.f32 %v1436, %v1795
        %v1808 = vadd.f32 %v1439, %v1798
        %v1809 = vld [vmem:[%s4] sm:$0x1]
        %v1811 = vlaneseq
        %v1812 = vshrl.u32 %v1811, 7
        %v1813 = vsub.s32 0, %v1812
        %v1814 = vrot.slane %v1809, %v1813
        %v1816 = vadd.f32 %v1801, %v1814
        %v1817 = vadd.f32 %v1802, %v1814
        %v1818 = vadd.f32 %v1803, %v1814
        %v1819 = vadd.f32 %v1804, %v1814
        %v1820 = vadd.f32 %v1805, %v1814
        %v1821 = vadd.f32 %v1806, %v1814
        %v1822 = vadd.f32 %v1807, %v1814
        %v1823 = vadd.f32 %v1808, %v1814
        %v1824 = vmax.f32 %v1816, 0.0
        %v1825 = vmax.f32 %v1817, 0.0
        %v1826 = vmax.f32 %v1818, 0.0
        %v1827 = vmax.f32 %v1819, 0.0
        %v1828 = vmax.f32 %v1820, 0.0
        %v1829 = vmax.f32 %v1821, 0.0
        %v1830 = vmax.f32 %v1822, 0.0
        %v1831 = vmax.f32 %v1823, 0.0
        %v1832 = vpack.c.bf16 %v1825, %v1824
        %v1833 = vpack.c.bf16 %v1827, %v1826
        %v1834 = vpack.c.bf16 %v1829, %v1828
        %v1835 = vpack.c.bf16 %v1831, %v1830
        %v1836 = vld [vmem:[%s5] sm:$0xf]
        %v1837 = vld [vmem:[%s5 + $0x4] sm:$0xf]
        %v1838 = vld [vmem:[%s5 + $0x8] sm:$0xf]
        %v1839 = vld [vmem:[%s5 + $0xc] sm:$0xf]
        %v1840 = vld [vmem:[%s5 + $0x10] sm:$0xf]
        %v1841 = vld [vmem:[%s5 + $0x14] sm:$0xf]
        %v1842 = vld [vmem:[%s5 + $0x18] sm:$0xf]
        %v1843 = vld [vmem:[%s5 + $0x1c] sm:$0xf]
        %v1844 = vld [vmem:[%s5 + $0x20] sm:$0xf]
        %v1845 = vld [vmem:[%s5 + $0x24] sm:$0xf]
        %v1846 = vld [vmem:[%s5 + $0x28] sm:$0xf]
        %v1847 = vld [vmem:[%s5 + $0x2c] sm:$0xf]
        %v1848 = vld [vmem:[%s5 + $0x30] sm:$0xf]
        %v1849 = vld [vmem:[%s5 + $0x34] sm:$0xf]
        %v1850 = vld [vmem:[%s5 + $0x38] sm:$0xf]
        %v1851 = vld [vmem:[%s5 + $0x3c] sm:$0xf]
        %v1852 = vld [vmem:[%s6] sm:$0x1]
        %v1854 = vlaneseq
        %v1855 = vshrl.u32 %v1854, 7
        %v1856 = vsub.s32 0, %v1855
        %v1857 = vrot.slane %v1852, %v1856
        %v1875 = vunpack.c.l.b16 %v1836
        %v1876 = vunpack.c.l.b16 %v1837
        %v1877 = vunpack.c.l.b16 %v1838
        %v1878 = vunpack.c.l.b16 %v1839
        %v1879 = vunpack.c.l.b16 %v1840
        %v1880 = vunpack.c.l.b16 %v1841
        %v1881 = vunpack.c.l.b16 %v1842
        %v1882 = vunpack.c.l.b16 %v1843
        %v1883 = vunpack.c.l.b16 %v1844
        %v1884 = vunpack.c.l.b16 %v1845
        %v1885 = vunpack.c.l.b16 %v1846
        %v1886 = vunpack.c.l.b16 %v1847
        %v1887 = vunpack.c.l.b16 %v1848
        %v1888 = vunpack.c.l.b16 %v1849
        %v1889 = vunpack.c.l.b16 %v1850
        %v1890 = vunpack.c.l.b16 %v1851
        %v1891 = vpack.c.b16 %v1876, %v1875
        %v1892 = vpack.c.b16 %v1878, %v1877
        %v1893 = vpack.c.b16 %v1880, %v1879
        %v1894 = vpack.c.b16 %v1882, %v1881
        %v1895 = vpack.c.b16 %v1884, %v1883
        %v1896 = vpack.c.b16 %v1886, %v1885
        %v1897 = vpack.c.b16 %v1888, %v1887
        %v1898 = vpack.c.b16 %v1890, %v1889
        %1907 = vmatprep.subr.bf16.mxu0 0
        %1908 = vmatpush1.bf16.msra.mxu0 %v1891
        %1909 = vmatprep.subr.bf16.mxu0 0
        %1910 = vmatpush1.bf16.msra.mxu0 %v1892
        %1911 = vmatprep.subr.bf16.mxu0 0
        %1912 = vmatpush1.bf16.msra.mxu0 %v1893
        %1913 = vmatprep.subr.bf16.mxu0 0
        %1914 = vmatpush1.bf16.msra.mxu0 %v1894
        %1915 = vmatprep.subr.bf16.mxu0 0
        %1916 = vmatpush1.bf16.msra.mxu0 %v1895
        %1917 = vmatprep.subr.bf16.mxu0 0
        %1918 = vmatpush1.bf16.msra.mxu0 %v1896
        %1919 = vmatprep.subr.bf16.mxu0 0
        %1920 = vmatpush1.bf16.msra.mxu0 %v1897
        %1921 = vmatprep.subr.bf16.mxu0 0
        %1922 = vmatpush1.bf16.msra.mxu0 %v1898
        %1923 = vmatprep.subr.bf16.mxu0 0
        %1924 = vmatpush1.bf16.msra.mxu0 0
        %1925 = vmatprep.subr.bf16.mxu0 0
        %1926 = vmatpush1.bf16.msra.mxu0 0
        %1927 = vmatprep.subr.bf16.mxu0 0
        %1928 = vmatpush1.bf16.msra.mxu0 0
        %1929 = vmatprep.subr.bf16.mxu0 0
        %1930 = vmatpush1.bf16.msra.mxu0 0
        %1931 = vmatprep.subr.bf16.mxu0 0
        %1932 = vmatpush1.bf16.msra.mxu0 0
        %1933 = vmatprep.subr.bf16.mxu0 0
        %1934 = vmatpush1.bf16.msra.mxu0 0
        %1935 = vmatprep.subr.bf16.mxu0 0
        %1936 = vmatpush1.bf16.msra.mxu0 0
        %1937 = vmatprep.subr.bf16.mxu0 0
        %1938 = vmatpush1.bf16.msra.mxu0 0
        %1939 = vmatprep.mubr.bf16.mxu0 0
        %1940 = vmatmul.mubr.bf16.gmra.mrb[0].mxu0 %v1832
        %v1941 = vpop.f32.mrb[0].mxu0
        %v1942 = vadd.f32 %v1857, %v1941
        %v1943 = vpop.f32.mrb[0].mxu0
        %v1944 = vpop.f32.mrb[0].mxu0
        %v1945 = vadd.f32 %v1857, %v1944
        %v1946 = vpop.f32.mrb[0].mxu0
        %1947 = vmatprep.mubr.bf16.mxu0 0
        %1948 = vmatmul.mubr.bf16.gmra.mrb[0].mxu0 %v1833
        %v1949 = vpop.f32.mrb[0].mxu0
        %v1950 = vadd.f32 %v1857, %v1949
        %v1951 = vpop.f32.mrb[0].mxu0
        %v1952 = vpop.f32.mrb[0].mxu0
        %v1953 = vadd.f32 %v1857, %v1952
        %v1954 = vpop.f32.mrb[0].mxu0
        %1955 = vmatprep.mubr.bf16.mxu0 0
        %1956 = vmatmul.mubr.bf16.gmra.mrb[0].mxu0 %v1834
        %v1957 = vpop.f32.mrb[0].mxu0
        %v1958 = vadd.f32 %v1857, %v1957
        %v1959 = vpop.f32.mrb[0].mxu0
        %v1960 = vpop.f32.mrb[0].mxu0
        %v1961 = vadd.f32 %v1857, %v1960
        %v1962 = vpop.f32.mrb[0].mxu0
        %1963 = vmatprep.mubr.bf16.mxu0 0
        %1964 = vmatmul.mubr.bf16.gmra.mrb[0].mxu0 %v1835
        %v1965 = vpop.f32.mrb[0].mxu0
        %v1966 = vadd.f32 %v1857, %v1965
        %v1967 = vpop.f32.mrb[0].mxu0
        %v1968 = vpop.f32.mrb[0].mxu0
        %v1969 = vadd.f32 %v1857, %v1968
        %v1970 = vpop.f32.mrb[0].mxu0
        %1971 = vdwg.mxu0
        %v1972 = vunpack.c.l.bf16 %v301
        %v1973 = vunpack.c.l.bf16 %v302
        %v1974 = vunpack.c.l.bf16 %v303
        %v1975 = vunpack.c.l.bf16 %v304
        %v1976 = vunpack.c.l.bf16 %v305
        %v1977 = vunpack.c.l.bf16 %v306
        %v1978 = vunpack.c.l.bf16 %v307
        %v1979 = vunpack.c.l.bf16 %v308
        %v1980 = vadd.f32 %v1942, %v1972
        %v1981 = vadd.f32 %v1945, %v1973
        %v1982 = vadd.f32 %v1950, %v1974
        %v1983 = vadd.f32 %v1953, %v1975
        %v1984 = vadd.f32 %v1958, %v1976
        %v1985 = vadd.f32 %v1961, %v1977
        %v1986 = vadd.f32 %v1966, %v1978
        %v1987 = vadd.f32 %v1969, %v1979
        %v1988 = vmax.f32 %v1980, 0.0
        %v1989 = vmax.f32 %v1981, 0.0
        %v1990 = vmax.f32 %v1982, 0.0
        %v1991 = vmax.f32 %v1983, 0.0
        %v1992 = vmax.f32 %v1984, 0.0
        %v1993 = vmax.f32 %v1985, 0.0
        %v1994 = vmax.f32 %v1986, 0.0
        %v1995 = vmax.f32 %v1987, 0.0
        %v1996 = vpack.c.bf16 %v1989, %v1988
        %v1997 = vpack.c.bf16 %v1991, %v1990
        %v1998 = vpack.c.bf16 %v1993, %v1992
        %v1999 = vpack.c.bf16 %v1995, %v1994
        %v2004 = vunpack.c.l.b16 %v1996
        %v2005 = vunpack.c.h.b16 %v1996
        %v2006 = vunpack.c.l.b16 %v1997
        %v2007 = vunpack.c.h.b16 %v1997
        %v2008 = vunpack.c.l.b16 %v1998
        %v2009 = vunpack.c.h.b16 %v1998
        %v2010 = vunpack.c.l.b16 %v1999
        %v2011 = vunpack.c.h.b16 %v1999
        %v2012 = vpack.c.b16 %v2004, %v2004
        %v2013 = vpack.c.b16 %v2005, %v2005
        %v2014 = vpack.c.b16 %v2006, %v2006
        %v2015 = vpack.c.b16 %v2007, %v2007
        %v2016 = vpack.c.b16 %v2008, %v2008
        %v2017 = vpack.c.b16 %v2009, %v2009
        %v2018 = vpack.c.b16 %v2010, %v2010
        %v2019 = vpack.c.b16 %v2011, %v2011
        %2028 = vst [vmem:[%s293] sm:$0xf] %v2012
        %2029 = vst [vmem:[%s293 + $0x4] sm:$0xf] %v2013
        %2030 = vst [vmem:[%s293 + $0x8] sm:$0xf] %v2014
        %2031 = vst [vmem:[%s293 + $0xc] sm:$0xf] %v2015
        %2032 = vst [vmem:[%s293 + $0x10] sm:$0xf] %v2016
        %2033 = vst [vmem:[%s293 + $0x14] sm:$0xf] %v2017
        %2034 = vst [vmem:[%s293 + $0x18] sm:$0xf] %v2018
        %2035 = vst [vmem:[%s293 + $0x1c] sm:$0xf] %v2019
        %p2036 = scmp.lt.s32.totalorder %s19, 1
        %s2037 = scalar_select %p2036, %s19, 1
        %s2038 = smul.addr %s2037, 8
        %s2039 = smul.addr %s2038, 4
        %s2040 = scalar_lea.vmem %s7, %s2039
        // Predicated region
        $region53: #{_lambda_.1} parent=47 // pred_check
          %p2041 = pneg %p189
        $region54: #{_lambda_.1} parent=47 // pred_check_branch
          %2043 = sbr.rel (%p2041) target = $region56
        $region55: #{_lambda_.1} parent=47 // pred_region
          _
        $region56: #{_lambda_.1} parent=47 // pred_fallthru
          _
      $region48: #{_lambda_.1} parent=5 // pred_fallthru
        _
      %p2044 = scmp.le.s32.totalorder 2, %s14
      // Predicated region
      $region57: #{_lambda_.1} parent=5 // pred_check
        %p2045 = pneg %p2044
      $region58: #{_lambda_.1} parent=5 // pred_check_branch
        %2047 = sbr.rel (%p2045) target = $region60
      $region59: #{_lambda_.1} parent=5 // pred_region
        %s2048 = ssub.s32 %s14, 2
        // Predicated region
        $region61: #{_lambda_.1} parent=59 // pred_check
          %p2049 = pneg %p195
        $region62: #{_lambda_.1} parent=59 // pred_check_branch
          %2051 = sbr.rel (%p2049) target = $region64
        $region63: #{_lambda_.1} parent=59 // pred_region
          %p2052 = scmp.lt.s32.totalorder %s20, 1
          %s2053 = scalar_select %p2052, %s20, 1
          %s2054 = smul.addr %s2053, 8
          %s2055 = smul.addr %s2054, 4
          %s2056 = scalar_lea.vmem %s7, %s2055
        $region64: #{_lambda_.1} parent=59 // pred_fallthru
          _
      $region60: #{_lambda_.1} parent=5 // pred_fallthru
        _
    $region6: #{_lambda_.1} parent=1 // loop_footer
      %s18 = sadd.s32 1, %s14
    $region7: #{_lambda_.1} parent=1 // loop_footer_branch
      %13 = sbr.rel target = $region3
    $region8: #{_lambda_.1} parent=1 // loop_exit
      _
    %2057 = vsyncpa [#allocation4], 1
    %s2058 = scalar_lea.sflag [#allocation4], 1
    %2059 = vsyncpa %s2058, 1

</llo_original>
